<compile_context>
chip_gen: v5e
topology: v5e:2x2
jax: 0.10.0
libtpu: 0.0.40
codegen_flags: <defaults>
</compile_context>

<pallas_src>
import math
import functools

import numpy as np
import jax
import jax.numpy as jnp
from jax.experimental import pallas as pl
from jax.experimental.pallas import tpu as pltpu


def _round_up(n: int, m: int) -> int:
    return ((n + m - 1) // m) * m


def _cdiv(a: int, b: int) -> int:
    return (a + b - 1) // b


def _fourier_kernel(x_ref, out_ref, *, inv_wl):
    # x_ref:   [Tsub, 128]          float32 (sublane/lane dense tile of inputs)
    # out_ref: [2, half, Tsub, 128] float32:
    #            out[0, h] = sin(x * inv_wl[h]),  out[1, h] = cos(x * inv_wl[h])
    # inv_wl are Python floats baked at trace time -> scalar broadcasts only,
    # no captured constant arrays, no cross-sublane data movement.
    x = x_ref[...]                                   # [Tsub, 128]
    for h, w in enumerate(inv_wl):
        prod = x * w                                 # scalar-broadcast VPU mul
        out_ref[0, h] = jnp.sin(prod)                # dense (Tsub,128) store
        out_ref[1, h] = jnp.cos(prod)                # dense (Tsub,128) store


class FourierEmbedding:
    """JAX/Pallas port of tnp.networks.embeddings.FourierEmbedding."""

    def __init__(self, lower, upper, active_dim, assert_range=True,
                 num_wavelengths=10, tile_lanes=65536):
        if num_wavelengths % 2 != 0:
            raise ValueError("The dimensionality must be a multiple of two.")
        if tile_lanes % 1024 != 0:
            raise ValueError("tile_lanes must be a multiple of 1024 (8*128).")
        self.lower = float(lower)
        self.upper = float(upper)
        self.active_dims = (active_dim,)
        self.assert_range = assert_range
        self.num_wavelengths = num_wavelengths
        self.tile_lanes = tile_lanes

        half = num_wavelengths // 2
        # torch.logspace(log10(lower), log10(upper), half, base=10), float64
        wavelengths = np.logspace(math.log10(self.lower),
                                  math.log10(self.upper), half, base=10.0)
        # 2*pi / wavelength, rounded once to f32; baked as Python scalars.
        self._inv_wl = tuple(
            float(v) for v in (2.0 * np.pi / wavelengths).astype(np.float32))

    def _encode(self, x2d, tile_rows):
        """x2d: [rows, 128] f32 with rows % tile_rows == 0.

        Returns the kernel-native dense layout [2, half, rows, 128]
        (axis 0: 0=sin / 1=cos, axis 1: wavelength).
        """
        rows, lanes = x2d.shape
        assert lanes == 128 and rows % tile_rows == 0
        half = self.num_wavelengths // 2
        n = rows * lanes
        grid = (rows // tile_rows,)
        return pl.pallas_call(
            functools.partial(_fourier_kernel, inv_wl=self._inv_wl),
            out_shape=jax.ShapeDtypeStruct((2, half, rows, lanes), jnp.float32),
            grid=grid,
            in_specs=[pl.BlockSpec((tile_rows, lanes), lambda i: (i, 0))],
            out_specs=pl.BlockSpec((2, half, tile_rows, lanes),
                                   lambda i: (0, 0, i, 0)),
            compiler_params=pltpu.CompilerParams(
                dimension_semantics=("parallel",)),
            cost_estimate=pl.CostEstimate(
                flops=half * n,                       # half scalar muls / elem
                transcendentals=2 * half * n,         # half sins + half coss
                bytes_accessed=4 * n + 4 * 2 * half * n),
        )(x2d)

    def __call__(self, x):
        x = jnp.asarray(x, dtype=jnp.float32)
        if x.ndim < 1 or x.shape[-1] != 1:
            raise ValueError("expected x[..., 1] (single active dimension).")
        lead = x.shape[:-1]
        M = int(np.prod(lead)) if lead else 1
        W = self.num_wavelengths

        # --- tiling: pad M to dense (rows, 128) with rows % tile_rows == 0 ---
        rows = _cdiv(M, 128)
        max_tile_rows = max(8, self.tile_lanes // 128)
        if rows <= 8:
            tile_rows = rows                     # block == full extent is legal
        else:
            # >=2 grid steps whenever possible so v7x can use both TensorCores
            tile_rows = min(max_tile_rows, _round_up(_cdiv(rows, 2), 8))
        rows_p = _round_up(rows, tile_rows)
        Mp = rows_p * 128

        flat = x.reshape(M)
        if Mp != M:
            flat = jnp.pad(flat, (0, Mp - M))    # zero padding, sliced off below
        x2d = flat.reshape(rows_p, 128)

        out4 = self._encode(x2d, tile_rows)      # [2, half, rows_p, 128]

        # kernel-native -> torch layout: [rows,128,2,half] -> [Mp, W] -> [..., W]
        out = jnp.transpose(out4, (2, 3, 0, 1)).reshape(Mp, W)[:M]
        out = out.reshape(*lead, W) if lead else out.reshape(W)

        if self.assert_range:
            # Same semantics as the torch module (elementwise lower bound,
            # global upper bound). Host sync happens after kernel dispatch so
            # it overlaps; under jit the flag is a tracer and we skip the raise.
            xa = jnp.abs(x)
            in_range = jnp.logical_and(self.lower <= xa,
                                       jnp.all(xa <= self.upper))
            ok = jnp.all(jnp.logical_or(in_range, x == 0))
            try:
                concrete_ok = bool(ok)
            except jax.errors.TracerBoolConversionError:
                concrete_ok = True  # TODO(synk): cannot raise host-side under jit
            if not concrete_ok:
                raise AssertionError(
                    f"The input tensor is not within the configured range "
                    f"`[{self.lower}, {self.upper}]`.")
        return out


def _reference_f64(x_np, lower, upper, num_wavelengths):
    # numpy float64 reference matching the torch forward exactly
    half = num_wavelengths // 2
    wl = np.logspace(math.log10(lower), math.log10(upper), half, base=10.0)
    prod = x_np.astype(np.float64) * 2.0 * np.pi / wl
    return np.concatenate([np.sin(prod), np.cos(prod)], axis=-1).astype(
        np.float32)


if __name__ == "__main__":
    key = jax.random.PRNGKey(0)
    lower, upper, num_wavelengths = 0.1, 10.0, 10
    emb = FourierEmbedding(lower=lower, upper=upper, active_dim=0,
                           assert_range=True,
                           num_wavelengths=num_wavelengths)

    # Case 1: small shape, single-step grid (block == full extent).
    k1, k2 = jax.random.split(key)
    batch, seq = 2, 8
    x1 = jax.random.uniform(k1, (batch, seq, 1),
                            minval=lower, maxval=upper, dtype=jnp.float32)
    out1 = jax.block_until_ready(emb(x1))
    assert out1.shape == (batch, seq, num_wavelengths), out1.shape
    assert out1.dtype == jnp.float32
    ref1 = _reference_f64(np.asarray(x1), lower, upper, num_wavelengths)
    np.testing.assert_allclose(np.asarray(out1), ref1, rtol=0.0, atol=5e-4)

    # Case 2: exercises rows > 8 (multi-step parallel grid) and padding.
    x2 = jax.random.uniform(k2, (4, 300, 1),
                            minval=lower, maxval=upper, dtype=jnp.float32)
    out2 = jax.block_until_ready(emb(x2))
    assert out2.shape == (4, 300, num_wavelengths), out2.shape
    ref2 = _reference_f64(np.asarray(x2), lower, upper, num_wavelengths)
    np.testing.assert_allclose(np.asarray(out2), ref2, rtol=0.0, atol=5e-4)

    print("KERNEL_OK")
</pallas_src>

<mosaic_0001>
module attributes {stable_mosaic.version = 11 : i64} {
  func.func @_fourier_kernel(%arg0: i32, %arg1: memref<1x128xf32, #tpu.memory_space<vmem>>, %arg2: memref<2x5x1x128xf32, #tpu.memory_space<vmem>>) attributes {dimension_semantics = [#tpu.dimension_semantics<parallel>], iteration_bounds = array<i64: 1>, scalar_prefetch = 0 : i64, scratch_operands = 0 : i64, tpu.core_type = #tpu.core_type<tc>, window_params = [{transform_indices = @transform_0, window_bounds = array<i64: 1, 128>}, {transform_indices = @transform_1, window_bounds = array<i64: 2, 5, 1, 128>}]} {
    %c0 = arith.constant 0 : index
    %c0_0 = arith.constant 0 : index
    %0 = vector.load %arg1[%c0, %c0_0] : memref<1x128xf32, #tpu.memory_space<vmem>>, vector<1x128xf32>
    %cst = arith.constant 62.831852 : f32
    %1 = vector.broadcast %cst : f32 to vector<1x128xf32>
    %2 = arith.mulf %0, %1 : vector<1x128xf32>
    %3 = math.sin %2 : vector<1x128xf32>
    %c0_1 = arith.constant 0 : index
    %c0_2 = arith.constant 0 : index
    %c0_3 = arith.constant 0 : index
    %c0_4 = arith.constant 0 : index
    %4 = vector.load %arg2[%c0_1, %c0_2, %c0_3, %c0_4] : memref<2x5x1x128xf32, #tpu.memory_space<vmem>>, vector<1x1x1x128xf32>
    %5 = vector.shape_cast %4 : vector<1x1x1x128xf32> to vector<1x128xf32>
    %6 = vector.shape_cast %3 : vector<1x128xf32> to vector<1x1x1x128xf32>
    tpu.vector_store %arg2[%c0_1, %c0_2, %c0_3, %c0_4], %6 {strides = array<i32>} : memref<2x5x1x128xf32, #tpu.memory_space<vmem>>, vector<1x1x1x128xf32>,
    %7 = math.cos %2 : vector<1x128xf32>
    %c1 = arith.constant 1 : index
    %c0_5 = arith.constant 0 : index
    %c0_6 = arith.constant 0 : index
    %c0_7 = arith.constant 0 : index
    %8 = vector.load %arg2[%c1, %c0_5, %c0_6, %c0_7] : memref<2x5x1x128xf32, #tpu.memory_space<vmem>>, vector<1x1x1x128xf32>
    %9 = vector.shape_cast %8 : vector<1x1x1x128xf32> to vector<1x128xf32>
    %10 = vector.shape_cast %7 : vector<1x128xf32> to vector<1x1x1x128xf32>
    tpu.vector_store %arg2[%c1, %c0_5, %c0_6, %c0_7], %10 {strides = array<i32>} : memref<2x5x1x128xf32, #tpu.memory_space<vmem>>, vector<1x1x1x128xf32>,
    %cst_8 = arith.constant 19.8691769 : f32
    %11 = vector.broadcast %cst_8 : f32 to vector<1x128xf32>
    %12 = arith.mulf %0, %11 : vector<1x128xf32>
    %13 = math.sin %12 : vector<1x128xf32>
    %c0_9 = arith.constant 0 : index
    %c1_10 = arith.constant 1 : index
    %c0_11 = arith.constant 0 : index
    %c0_12 = arith.constant 0 : index
    %14 = vector.load %arg2[%c0_9, %c1_10, %c0_11, %c0_12] : memref<2x5x1x128xf32, #tpu.memory_space<vmem>>, vector<1x1x1x128xf32>
    %15 = vector.shape_cast %14 : vector<1x1x1x128xf32> to vector<1x128xf32>
    %16 = vector.shape_cast %13 : vector<1x128xf32> to vector<1x1x1x128xf32>
    tpu.vector_store %arg2[%c0_9, %c1_10, %c0_11, %c0_12], %16 {strides = array<i32>} : memref<2x5x1x128xf32, #tpu.memory_space<vmem>>, vector<1x1x1x128xf32>,
    %17 = math.cos %12 : vector<1x128xf32>
    %c1_13 = arith.constant 1 : index
    %c1_14 = arith.constant 1 : index
    %c0_15 = arith.constant 0 : index
    %c0_16 = arith.constant 0 : index
    %18 = vector.load %arg2[%c1_13, %c1_14, %c0_15, %c0_16] : memref<2x5x1x128xf32, #tpu.memory_space<vmem>>, vector<1x1x1x128xf32>
    %19 = vector.shape_cast %18 : vector<1x1x1x128xf32> to vector<1x128xf32>
    %20 = vector.shape_cast %17 : vector<1x128xf32> to vector<1x1x1x128xf32>
    tpu.vector_store %arg2[%c1_13, %c1_14, %c0_15, %c0_16], %20 {strides = array<i32>} : memref<2x5x1x128xf32, #tpu.memory_space<vmem>>, vector<1x1x1x128xf32>,
    %cst_17 = arith.constant 6.28318548 : f32
    %21 = vector.broadcast %cst_17 : f32 to vector<1x128xf32>
    %22 = arith.mulf %0, %21 : vector<1x128xf32>
    %23 = math.sin %22 : vector<1x128xf32>
    %c0_18 = arith.constant 0 : index
    %c2 = arith.constant 2 : index
    %c0_19 = arith.constant 0 : index
    %c0_20 = arith.constant 0 : index
    %24 = vector.load %arg2[%c0_18, %c2, %c0_19, %c0_20] : memref<2x5x1x128xf32, #tpu.memory_space<vmem>>, vector<1x1x1x128xf32>
    %25 = vector.shape_cast %24 : vector<1x1x1x128xf32> to vector<1x128xf32>
    %26 = vector.shape_cast %23 : vector<1x128xf32> to vector<1x1x1x128xf32>
    tpu.vector_store %arg2[%c0_18, %c2, %c0_19, %c0_20], %26 {strides = array<i32>} : memref<2x5x1x128xf32, #tpu.memory_space<vmem>>, vector<1x1x1x128xf32>,
    %27 = math.cos %22 : vector<1x128xf32>
    %c1_21 = arith.constant 1 : index
    %c2_22 = arith.constant 2 : index
    %c0_23 = arith.constant 0 : index
    %c0_24 = arith.constant 0 : index
    %28 = vector.load %arg2[%c1_21, %c2_22, %c0_23, %c0_24] : memref<2x5x1x128xf32, #tpu.memory_space<vmem>>, vector<1x1x1x128xf32>
    %29 = vector.shape_cast %28 : vector<1x1x1x128xf32> to vector<1x128xf32>
    %30 = vector.shape_cast %27 : vector<1x128xf32> to vector<1x1x1x128xf32>
    tpu.vector_store %arg2[%c1_21, %c2_22, %c0_23, %c0_24], %30 {strides = array<i32>} : memref<2x5x1x128xf32, #tpu.memory_space<vmem>>, vector<1x1x1x128xf32>,
    %cst_25 = arith.constant 1.98691761 : f32
    %31 = vector.broadcast %cst_25 : f32 to vector<1x128xf32>
    %32 = arith.mulf %0, %31 : vector<1x128xf32>
    %33 = math.sin %32 : vector<1x128xf32>
    %c0_26 = arith.constant 0 : index
    %c3 = arith.constant 3 : index
    %c0_27 = arith.constant 0 : index
    %c0_28 = arith.constant 0 : index
    %34 = vector.load %arg2[%c0_26, %c3, %c0_27, %c0_28] : memref<2x5x1x128xf32, #tpu.memory_space<vmem>>, vector<1x1x1x128xf32>
    %35 = vector.shape_cast %34 : vector<1x1x1x128xf32> to vector<1x128xf32>
    %36 = vector.shape_cast %33 : vector<1x128xf32> to vector<1x1x1x128xf32>
    tpu.vector_store %arg2[%c0_26, %c3, %c0_27, %c0_28], %36 {strides = array<i32>} : memref<2x5x1x128xf32, #tpu.memory_space<vmem>>, vector<1x1x1x128xf32>,
    %37 = math.cos %32 : vector<1x128xf32>
    %c1_29 = arith.constant 1 : index
    %c3_30 = arith.constant 3 : index
    %c0_31 = arith.constant 0 : index
    %c0_32 = arith.constant 0 : index
    %38 = vector.load %arg2[%c1_29, %c3_30, %c0_31, %c0_32] : memref<2x5x1x128xf32, #tpu.memory_space<vmem>>, vector<1x1x1x128xf32>
    %39 = vector.shape_cast %38 : vector<1x1x1x128xf32> to vector<1x128xf32>
    %40 = vector.shape_cast %37 : vector<1x128xf32> to vector<1x1x1x128xf32>
    tpu.vector_store %arg2[%c1_29, %c3_30, %c0_31, %c0_32], %40 {strides = array<i32>} : memref<2x5x1x128xf32, #tpu.memory_space<vmem>>, vector<1x1x1x128xf32>,
    %cst_33 = arith.constant 0.628318548 : f32
    %41 = vector.broadcast %cst_33 : f32 to vector<1x128xf32>
    %42 = arith.mulf %0, %41 : vector<1x128xf32>
    %43 = math.sin %42 : vector<1x128xf32>
    %c0_34 = arith.constant 0 : index
    %c4 = arith.constant 4 : index
    %c0_35 = arith.constant 0 : index
    %c0_36 = arith.constant 0 : index
    %44 = vector.load %arg2[%c0_34, %c4, %c0_35, %c0_36] : memref<2x5x1x128xf32, #tpu.memory_space<vmem>>, vector<1x1x1x128xf32>
    %45 = vector.shape_cast %44 : vector<1x1x1x128xf32> to vector<1x128xf32>
    %46 = vector.shape_cast %43 : vector<1x128xf32> to vector<1x1x1x128xf32>
    tpu.vector_store %arg2[%c0_34, %c4, %c0_35, %c0_36], %46 {strides = array<i32>} : memref<2x5x1x128xf32, #tpu.memory_space<vmem>>, vector<1x1x1x128xf32>,
    %47 = math.cos %42 : vector<1x128xf32>
    %c1_37 = arith.constant 1 : index
    %c4_38 = arith.constant 4 : index
    %c0_39 = arith.constant 0 : index
    %c0_40 = arith.constant 0 : index
    %48 = vector.load %arg2[%c1_37, %c4_38, %c0_39, %c0_40] : memref<2x5x1x128xf32, #tpu.memory_space<vmem>>, vector<1x1x1x128xf32>
    %49 = vector.shape_cast %48 : vector<1x1x1x128xf32> to vector<1x128xf32>
    %50 = vector.shape_cast %47 : vector<1x128xf32> to vector<1x1x1x128xf32>
    tpu.vector_store %arg2[%c1_37, %c4_38, %c0_39, %c0_40], %50 {strides = array<i32>} : memref<2x5x1x128xf32, #tpu.memory_space<vmem>>, vector<1x1x1x128xf32>,
    return
  }
  func.func @transform_0(%arg0: i32) -> (i32, i32) {
    %c0_i32 = arith.constant 0 : i32
    %c0_i32_0 = arith.constant 0 : i32
    return %arg0, %c0_i32 : i32, i32
  }
  func.func @transform_1(%arg0: i32) -> (i32, i32, i32, i32) {
    %c0_i32 = arith.constant 0 : i32
    %c0_i32_0 = arith.constant 0 : i32
    %c0_i32_1 = arith.constant 0 : i32
    %c0_i32_2 = arith.constant 0 : i32
    return %c0_i32, %c0_i32_0, %arg0, %c0_i32_1 : i32, i32, i32, i32
  }
}

</mosaic_0001>

<llo_original>
// kernel: tpu_custom_call.1
$region0: #{tpu_custom_call.1}
  #allocation0 [shape = 'u32[]', space=smem, size = 0x4, offset = 0x4, fixed_abs, tag = 'smem constant byte address 0x4 - core index']
  #allocation1 [shape = 'u32[72,128]{1,0:T(1,128)}', space=vmem, size = 0x9000, scoped, tag = 'internal scratch']
  %s0 = inlined_call_operand.hbm [shape: f32[1,128], index: 0, kind: input, shape index: {}]
  %s1 = inlined_call_operand.hbm [shape: f32[2,5,1,128], index: 1, kind: output, shape index: {}]
  %s2 = sld [smem:[#allocation0]]
  $region18: #{tpu_custom_call.1} parent=0
    _
  %s4 = ssub.s32 1, %s2
  %s5 = scalar_select 0, %s4, %s2
  $region1: #{tpu_custom_call.1} parent=0
    #allocation2 [shape = 'u8[512]{0}', space=vmem, size = 0x400, scoped, tag = 'input window, operand 0, single buffered']
    #allocation3 [shape = 's32[1]{0}', space=sflag, size = 0x4, scoped, tag = 'scoped memory for tpu_custom_call.1']
    #allocation4 [shape = 's32[1]{0}', space=sflag, size = 0x4, scoped, tag = 'scoped memory for tpu_custom_call.1']
    #allocation5 [shape = 'u8[5120]{0}', space=vmem, size = 0x1400, scoped, tag = 'output window, operand 0, single buffered']
    %6 = vsyncpa [#allocation3], 0
    %7 = vsyncpa [#allocation4], 0
    // Predicated region
    $region2: #{tpu_custom_call.1} parent=1 // pred_check
      _
    $region3: #{tpu_custom_call.1} parent=1 // pred_check_branch
      %9 = sbr.rel (0) target = $region5
    $region4: #{tpu_custom_call.1} parent=1 // pred_region
      %11 = vsyncadd [#allocation3], 0
      %s13 = sshll.u32 %s0, 4
      %s14 = int_to_ptr.hbm [resolvable:$true] %s13
      %s15 = sshll.u32 [#allocation2], 4
      %s16 = int_to_ptr.vmem [resolvable:$true] %s15
      %18 = dma.hbm_to_vmem [thread:$0]  %s14, 16, %s16, [#allocation3]
    $region5: #{tpu_custom_call.1} parent=1 // pred_fallthru
      _
    // Predicated region
    $region6: #{tpu_custom_call.1} parent=1 // pred_check
      _
    $region7: #{tpu_custom_call.1} parent=1 // pred_check_branch
      %20 = sbr.rel (0) target = $region9
    $region8: #{tpu_custom_call.1} parent=1 // pred_region
      %22 = dma.done [#allocation3], 16
    $region9: #{tpu_custom_call.1} parent=1 // pred_fallthru
      _
    %v23 = vld [vmem:[#allocation2] sm:$0x1]
    %v24 = vmul.f32 %v23, 62.831852
    %v25 = vand.u32 2147483647, %v24
    %vm26 = vcmp.le.f32.partialorder %v25, 0.7853982
    %vm27 = vcmp.lt.s32.totalorder %v24, 0
    %v28 = vand.u32 %v24, 2139095040
    %v29 = vshrl.u32 %v28, 23
    %v30 = vsub.s32 %v29, 127
    %v31 = vand.u32 2147483647, %v24
    %v32 = vand.u32 %v31, 8388607
    %v33 = vor.u32 %v32, 8388608
    %v34 = vsub.s32 0, %v33
    %v35 = vadd.s32 %v30, 1
    %vm36 = vcmp.gt.s32.totalorder %v35, 0
    %v37 = vsel %vm36, %v35, 0
    %v38 = vshrl.u32 %v37, 5
    %v39 = vand.u32 %v37, 31
    %v40 = vsub.s32 32, %v39
    %v41 = vshrl.u32 683565275, %v40
    %v42 = vshll.u32 683565275, %v39
    %v43 = vshrl.u32 2475754826, %v40
    %v44 = vor.u32 %v42, %v43
    %v45 = vshll.u32 2475754826, %v39
    %v46 = vshrl.u32 2131351028, %v40
    %v47 = vor.u32 %v45, %v46
    %v48 = vshll.u32 2131351028, %v39
    %v49 = vshrl.u32 2102212464, %v40
    %v50 = vor.u32 %v48, %v49
    %v51 = vshll.u32 2102212464, %v39
    %v52 = vshrl.u32 920167782, %v40
    %v53 = vor.u32 %v51, %v52
    %v54 = vshll.u32 920167782, %v39
    %v55 = vshrl.u32 1326507024, %v40
    %v56 = vor.u32 %v54, %v55
    %vm57 = vcmp.lt.s32.totalorder %v38, 1
    %vm58 = vcmp.lt.s32.totalorder %v38, 2
    %vm59 = vcmp.lt.s32.totalorder %v38, 3
    %vm60 = vcmp.lt.s32.totalorder %v38, 4
    %v61 = vsel %vm57, %v41, %v44
    %v62 = vsel %vm60, %v50, 2102212464
    %v63 = vsel %vm59, %v47, %v62
    %v64 = vsel %vm58, %v61, %v63
    %v65 = vsel %vm57, %v44, %v47
    %v66 = vsel %vm60, %v53, 920167782
    %v67 = vsel %vm59, %v50, %v66
    %v68 = vsel %vm58, %v65, %v67
    %v69 = vsel %vm57, %v47, %v50
    %v70 = vsel %vm60, %v56, 1326507024
    %v71 = vsel %vm59, %v53, %v70
    %v72 = vsel %vm58, %v69, %v71
    %v73 = vshll.u32 %v33, 8
    %v74 = vand.u32 %v73, 65535
    %v75 = vshrl.u32 %v73, 16
    %v76 = vand.u32 %v72, 65535
    %v77 = vshrl.u32 %v72, 16
    %v78 = vmul.u32 %v74, %v76
    %v79 = vmul.u32 %v74, %v77
    %v80 = vmul.u32 %v75, %v76
    %v81 = vmul.u32 %v75, %v77
    %v82 = vshll.u32 %v79, 16
    %v83 = vshrl.u32 %v79, 16
    %v84 = vshll.u32 %v80, 16
    %v85 = vshrl.u32 %v80, 16
    %vm86 = vc.u32 %v78, %v82
    %v87 = vsel %vm86, 1, 0
    %v88 = vadd.s32 %v78, %v82
    %v89 = vadd.s32 %v81, %v87
    %vm90 = vc.u32 %v88, %v84
    %v91 = vsel %vm90, 1, 0
    %v92 = vadd.s32 %v88, %v84
    %v93 = vadd.s32 %v89, %v91
    %v94 = vadd.s32 %v93, %v83
    %v95 = vadd.s32 %v94, %v85
    %v96 = vand.u32 %v73, 65535
    %v97 = vshrl.u32 %v73, 16
    %v98 = vand.u32 %v68, 65535
    %v99 = vshrl.u32 %v68, 16
    %v100 = vmul.u32 %v96, %v98
    %v101 = vmul.u32 %v96, %v99
    %v102 = vmul.u32 %v97, %v98
    %v103 = vmul.u32 %v97, %v99
    %v104 = vshll.u32 %v101, 16
    %v105 = vshrl.u32 %v101, 16
    %v106 = vshll.u32 %v102, 16
    %v107 = vshrl.u32 %v102, 16
    %vm108 = vc.u32 %v100, %v104
    %v109 = vsel %vm108, 1, 0
    %v110 = vadd.s32 %v100, %v104
    %v111 = vadd.s32 %v103, %v109
    %vm112 = vc.u32 %v110, %v106
    %v113 = vsel %vm112, 1, 0
    %v114 = vadd.s32 %v110, %v106
    %v115 = vadd.s32 %v111, %v113
    %v116 = vadd.s32 %v115, %v105
    %v117 = vadd.s32 %v116, %v107
    %v118 = vmul.u32 %v73, %v64
    %v119 = vadd.s32 %v95, %v114
    %vm120 = vc.u32 %v95, %v114
    %v121 = vadd.s32 %v117, 1
    %v122 = vsel %vm120, %v121, %v117
    %v123 = vadd.s32 %v118, %v122
    %v124 = vadd.s32 %v123, 536870912
    %v125 = vshrl.u32 %v124, 30
    %v126 = vshll.u32 %v125, 30
    %v127 = vsub.s32 %v123, %v126
    %vm128 = vcmp.lt.s32.totalorder %v127, 0
    %v129 = vsub.s32 0, %v127
    %v130 = vsel %vm128, %v129, %v127
    %v131 = vclz %v130
    %v132 = vsub.s32 %v131, 2
    %vm133 = vcmp.gt.s32.totalorder 0, %v132
    %v134 = vsel %vm133, 0, %v132
    %v135 = vsub.s32 32, %v134
    %v136 = vshll.u32 %v127, %v134
    %v137 = vshrl.u32 %v119, %v135
    %v138 = vor.u32 %v136, %v137
    %v139 = vsub.s32 4294967266, %v134
    %v140 = vadd.s32 %v139, 127
    %v141 = vshll.u32 %v140, 23
    %v142 = vor.u32 4788187, %v141
    %v143 = vand.u32 2147483647, %v142
    %v145 = vcvt.s32.f32 %v138
    %v146 = vmul.f32 %v145, %v143
    %v147 = vxor.u32 %v146, 2147483648
    %v148 = vsel %vm27, %v147, %v146
    %v149 = vsub.s32 4, %v125
    %v150 = vsel %vm27, %v149, %v125
    %v151 = vsel %vm26, %v24, %v148
    %v152 = vsel %vm26, 0, %v150
    %v153 = vmul.f32 %v151, %v151
    %v154 = vmul.f32 %v153, -0.001358992
    %v155 = vadd.f32 %v154, 0.041655596
    %v156 = vmul.f32 %v153, %v155
    %v157 = vadd.f32 %v156, -0.4999988
    %v158 = vmul.f32 %v153, %v157
    %v159 = vadd.f32 1.0, %v158
    %v160 = vmul.f32 %v151, %v151
    %v161 = vmul.f32 %v160, -0.00019511016
    %v162 = vadd.f32 %v161, 0.008332121
    %v163 = vmul.f32 %v160, %v162
    %v164 = vadd.f32 %v163, -0.16666654
    %v165 = vmul.f32 %v160, %v164
    %v166 = vadd.f32 %v165, 1.0
    %v167 = vmul.f32 %v166, %v151
    %vm168 = vweird.f32 %v24
    %v169 = vadd.s32 %v152, 3
    %v170 = vand.u32 %v169, 3
    %vm171 = vcmp.lt.s32.totalorder %v170, 2
    %vm172 = vcmp.eq.s32.totalorder %v170, 0
    %v173 = vxor.u32 %v167, 2147483648
    %v174 = vsel %vm172, %v159, %v173
    %vm175 = vcmp.eq.s32.totalorder %v170, 2
    %v176 = vxor.u32 %v159, 2147483648
    %v177 = vsel %vm175, %v176, %v167
    %v178 = vsel %vm171, %v174, %v177
    %v179 = vsel %vm168, nan, %v178
    %180 = vst [vmem:[#allocation5] sm:$0x1] %v179
    %v181 = vand.u32 2147483647, %v24
    %vm182 = vcmp.le.f32.partialorder %v181, 0.7853982
    %vm183 = vcmp.lt.s32.totalorder %v24, 0
    %v184 = vand.u32 %v24, 2139095040
    %v185 = vshrl.u32 %v184, 23
    %v186 = vsub.s32 %v185, 127
    %v187 = vand.u32 2147483647, %v24
    %v188 = vand.u32 %v187, 8388607
    %v189 = vor.u32 %v188, 8388608
    %v190 = vsub.s32 0, %v189
    %v191 = vadd.s32 %v186, 1
    %vm192 = vcmp.gt.s32.totalorder %v191, 0
    %v193 = vsel %vm192, %v191, 0
    %v194 = vshrl.u32 %v193, 5
    %v195 = vand.u32 %v193, 31
    %v196 = vsub.s32 32, %v195
    %v197 = vshrl.u32 683565275, %v196
    %v198 = vshll.u32 683565275, %v195
    %v199 = vshrl.u32 2475754826, %v196
    %v200 = vor.u32 %v198, %v199
    %v201 = vshll.u32 2475754826, %v195
    %v202 = vshrl.u32 2131351028, %v196
    %v203 = vor.u32 %v201, %v202
    %v204 = vshll.u32 2131351028, %v195
    %v205 = vshrl.u32 2102212464, %v196
    %v206 = vor.u32 %v204, %v205
    %v207 = vshll.u32 2102212464, %v195
    %v208 = vshrl.u32 920167782, %v196
    %v209 = vor.u32 %v207, %v208
    %v210 = vshll.u32 920167782, %v195
    %v211 = vshrl.u32 1326507024, %v196
    %v212 = vor.u32 %v210, %v211
    %vm213 = vcmp.lt.s32.totalorder %v194, 1
    %vm214 = vcmp.lt.s32.totalorder %v194, 2
    %vm215 = vcmp.lt.s32.totalorder %v194, 3
    %vm216 = vcmp.lt.s32.totalorder %v194, 4
    %v217 = vsel %vm213, %v197, %v200
    %v218 = vsel %vm216, %v206, 2102212464
    %v219 = vsel %vm215, %v203, %v218
    %v220 = vsel %vm214, %v217, %v219
    %v221 = vsel %vm213, %v200, %v203
    %v222 = vsel %vm216, %v209, 920167782
    %v223 = vsel %vm215, %v206, %v222
    %v224 = vsel %vm214, %v221, %v223
    %v225 = vsel %vm213, %v203, %v206
    %v226 = vsel %vm216, %v212, 1326507024
    %v227 = vsel %vm215, %v209, %v226
    %v228 = vsel %vm214, %v225, %v227
    %v229 = vshll.u32 %v189, 8
    %v230 = vand.u32 %v229, 65535
    %v231 = vshrl.u32 %v229, 16
    %v232 = vand.u32 %v228, 65535
    %v233 = vshrl.u32 %v228, 16
    %v234 = vmul.u32 %v230, %v232
    %v235 = vmul.u32 %v230, %v233
    %v236 = vmul.u32 %v231, %v232
    %v237 = vmul.u32 %v231, %v233
    %v238 = vshll.u32 %v235, 16
    %v239 = vshrl.u32 %v235, 16
    %v240 = vshll.u32 %v236, 16
    %v241 = vshrl.u32 %v236, 16
    %vm242 = vc.u32 %v234, %v238
    %v243 = vsel %vm242, 1, 0
    %v244 = vadd.s32 %v234, %v238
    %v245 = vadd.s32 %v237, %v243
    %vm246 = vc.u32 %v244, %v240
    %v247 = vsel %vm246, 1, 0
    %v248 = vadd.s32 %v244, %v240
    %v249 = vadd.s32 %v245, %v247
    %v250 = vadd.s32 %v249, %v239
    %v251 = vadd.s32 %v250, %v241
    %v252 = vand.u32 %v229, 65535
    %v253 = vshrl.u32 %v229, 16
    %v254 = vand.u32 %v224, 65535
    %v255 = vshrl.u32 %v224, 16
    %v256 = vmul.u32 %v252, %v254
    %v257 = vmul.u32 %v252, %v255
    %v258 = vmul.u32 %v253, %v254
    %v259 = vmul.u32 %v253, %v255
    %v260 = vshll.u32 %v257, 16
    %v261 = vshrl.u32 %v257, 16
    %v262 = vshll.u32 %v258, 16
    %v263 = vshrl.u32 %v258, 16
    %vm264 = vc.u32 %v256, %v260
    %v265 = vsel %vm264, 1, 0
    %v266 = vadd.s32 %v256, %v260
    %v267 = vadd.s32 %v259, %v265
    %vm268 = vc.u32 %v266, %v262
    %v269 = vsel %vm268, 1, 0
    %v270 = vadd.s32 %v266, %v262
    %v271 = vadd.s32 %v267, %v269
    %v272 = vadd.s32 %v271, %v261
    %v273 = vadd.s32 %v272, %v263
    %v274 = vmul.u32 %v229, %v220
    %v275 = vadd.s32 %v251, %v270
    %vm276 = vc.u32 %v251, %v270
    %v277 = vadd.s32 %v273, 1
    %v278 = vsel %vm276, %v277, %v273
    %v279 = vadd.s32 %v274, %v278
    %v280 = vadd.s32 %v279, 536870912
    %v281 = vshrl.u32 %v280, 30
    %v282 = vshll.u32 %v281, 30
    %v283 = vsub.s32 %v279, %v282
    %vm284 = vcmp.lt.s32.totalorder %v283, 0
    %v285 = vsub.s32 0, %v283
    %v286 = vsel %vm284, %v285, %v283
    %v287 = vclz %v286
    %v288 = vsub.s32 %v287, 2
    %vm289 = vcmp.gt.s32.totalorder 0, %v288
    %v290 = vsel %vm289, 0, %v288
    %v291 = vsub.s32 32, %v290
    %v292 = vshll.u32 %v283, %v290
    %v293 = vshrl.u32 %v275, %v291
    %v294 = vor.u32 %v292, %v293
    %v295 = vsub.s32 4294967266, %v290
    %v296 = vadd.s32 %v295, 127
    %v297 = vshll.u32 %v296, 23
    %v298 = vor.u32 4788187, %v297
    %v299 = vand.u32 2147483647, %v298
    %v301 = vcvt.s32.f32 %v294
    %v302 = vmul.f32 %v301, %v299
    %v303 = vxor.u32 %v302, 2147483648
    %v304 = vsel %vm183, %v303, %v302
    %v305 = vsub.s32 4, %v281
    %v306 = vsel %vm183, %v305, %v281
    %v307 = vsel %vm182, %v24, %v304
    %v308 = vsel %vm182, 0, %v306
    %v309 = vmul.f32 %v307, %v307
    %v310 = vmul.f32 %v309, -0.001358992
    %v311 = vadd.f32 %v310, 0.041655596
    %v312 = vmul.f32 %v309, %v311
    %v313 = vadd.f32 %v312, -0.4999988
    %v314 = vmul.f32 %v309, %v313
    %v315 = vadd.f32 1.0, %v314
    %v316 = vmul.f32 %v307, %v307
    %v317 = vmul.f32 %v316, -0.00019511016
    %v318 = vadd.f32 %v317, 0.008332121
    %v319 = vmul.f32 %v316, %v318
    %v320 = vadd.f32 %v319, -0.16666654
    %v321 = vmul.f32 %v316, %v320
    %v322 = vadd.f32 %v321, 1.0
    %v323 = vmul.f32 %v322, %v307
    %vm324 = vweird.f32 %v24
    %v325 = vand.u32 %v308, 3
    %vm326 = vcmp.lt.s32.totalorder %v325, 2
    %vm327 = vcmp.eq.s32.totalorder %v325, 0
    %v328 = vxor.u32 %v323, 2147483648
    %v329 = vsel %vm327, %v315, %v328
    %vm330 = vcmp.eq.s32.totalorder %v325, 2
    %v331 = vxor.u32 %v315, 2147483648
    %v332 = vsel %vm330, %v331, %v323
    %v333 = vsel %vm326, %v329, %v332
    %v334 = vsel %vm324, nan, %v333
    %s335 = scalar_lea.vmem [#allocation5], 5
    %336 = vst [vmem:[%s335] sm:$0x1] %v334
    %v337 = vmul.f32 %v23, 19.869177
    %v338 = vand.u32 2147483647, %v337
    %vm339 = vcmp.le.f32.partialorder %v338, 0.7853982
    %vm340 = vcmp.lt.s32.totalorder %v337, 0
    %v341 = vand.u32 %v337, 2139095040
    %v342 = vshrl.u32 %v341, 23
    %v343 = vsub.s32 %v342, 127
    %v344 = vand.u32 2147483647, %v337
    %v345 = vand.u32 %v344, 8388607
    %v346 = vor.u32 %v345, 8388608
    %v347 = vsub.s32 0, %v346
    %v348 = vadd.s32 %v343, 1
    %vm349 = vcmp.gt.s32.totalorder %v348, 0
    %v350 = vsel %vm349, %v348, 0
    %v351 = vshrl.u32 %v350, 5
    %v352 = vand.u32 %v350, 31
    %v353 = vsub.s32 32, %v352
    %v354 = vshrl.u32 683565275, %v353
    %v355 = vshll.u32 683565275, %v352
    %v356 = vshrl.u32 2475754826, %v353
    %v357 = vor.u32 %v355, %v356
    %v358 = vshll.u32 2475754826, %v352
    %v359 = vshrl.u32 2131351028, %v353
    %v360 = vor.u32 %v358, %v359
    %v361 = vshll.u32 2131351028, %v352
    %v362 = vshrl.u32 2102212464, %v353
    %v363 = vor.u32 %v361, %v362
    %v364 = vshll.u32 2102212464, %v352
    %v365 = vshrl.u32 920167782, %v353
    %v366 = vor.u32 %v364, %v365
    %v367 = vshll.u32 920167782, %v352
    %v368 = vshrl.u32 1326507024, %v353
    %v369 = vor.u32 %v367, %v368
    %vm370 = vcmp.lt.s32.totalorder %v351, 1
    %vm371 = vcmp.lt.s32.totalorder %v351, 2
    %vm372 = vcmp.lt.s32.totalorder %v351, 3
    %vm373 = vcmp.lt.s32.totalorder %v351, 4
    %v374 = vsel %vm370, %v354, %v357
    %v375 = vsel %vm373, %v363, 2102212464
    %v376 = vsel %vm372, %v360, %v375
    %v377 = vsel %vm371, %v374, %v376
    %v378 = vsel %vm370, %v357, %v360
    %v379 = vsel %vm373, %v366, 920167782
    %v380 = vsel %vm372, %v363, %v379
    %v381 = vsel %vm371, %v378, %v380
    %v382 = vsel %vm370, %v360, %v363
    %v383 = vsel %vm373, %v369, 1326507024
    %v384 = vsel %vm372, %v366, %v383
    %v385 = vsel %vm371, %v382, %v384
    %v386 = vshll.u32 %v346, 8
    %v387 = vand.u32 %v386, 65535
    %v388 = vshrl.u32 %v386, 16
    %v389 = vand.u32 %v385, 65535
    %v390 = vshrl.u32 %v385, 16
    %v391 = vmul.u32 %v387, %v389
    %v392 = vmul.u32 %v387, %v390
    %v393 = vmul.u32 %v388, %v389
    %v394 = vmul.u32 %v388, %v390
    %v395 = vshll.u32 %v392, 16
    %v396 = vshrl.u32 %v392, 16
    %v397 = vshll.u32 %v393, 16
    %v398 = vshrl.u32 %v393, 16
    %vm399 = vc.u32 %v391, %v395
    %v400 = vsel %vm399, 1, 0
    %v401 = vadd.s32 %v391, %v395
    %v402 = vadd.s32 %v394, %v400
    %vm403 = vc.u32 %v401, %v397
    %v404 = vsel %vm403, 1, 0
    %v405 = vadd.s32 %v401, %v397
    %v406 = vadd.s32 %v402, %v404
    %v407 = vadd.s32 %v406, %v396
    %v408 = vadd.s32 %v407, %v398
    %v409 = vand.u32 %v386, 65535
    %v410 = vshrl.u32 %v386, 16
    %v411 = vand.u32 %v381, 65535
    %v412 = vshrl.u32 %v381, 16
    %v413 = vmul.u32 %v409, %v411
    %v414 = vmul.u32 %v409, %v412
    %v415 = vmul.u32 %v410, %v411
    %v416 = vmul.u32 %v410, %v412
    %v417 = vshll.u32 %v414, 16
    %v418 = vshrl.u32 %v414, 16
    %v419 = vshll.u32 %v415, 16
    %v420 = vshrl.u32 %v415, 16
    %vm421 = vc.u32 %v413, %v417
    %v422 = vsel %vm421, 1, 0
    %v423 = vadd.s32 %v413, %v417
    %v424 = vadd.s32 %v416, %v422
    %vm425 = vc.u32 %v423, %v419
    %v426 = vsel %vm425, 1, 0
    %v427 = vadd.s32 %v423, %v419
    %v428 = vadd.s32 %v424, %v426
    %v429 = vadd.s32 %v428, %v418
    %v430 = vadd.s32 %v429, %v420
    %v431 = vmul.u32 %v386, %v377
    %v432 = vadd.s32 %v408, %v427
    %vm433 = vc.u32 %v408, %v427
    %v434 = vadd.s32 %v430, 1
    %v435 = vsel %vm433, %v434, %v430
    %v436 = vadd.s32 %v431, %v435
    %v437 = vadd.s32 %v436, 536870912
    %v438 = vshrl.u32 %v437, 30
    %v439 = vshll.u32 %v438, 30
    %v440 = vsub.s32 %v436, %v439
    %vm441 = vcmp.lt.s32.totalorder %v440, 0
    %v442 = vsub.s32 0, %v440
    %v443 = vsel %vm441, %v442, %v440
    %v444 = vclz %v443
    %v445 = vsub.s32 %v444, 2
    %vm446 = vcmp.gt.s32.totalorder 0, %v445
    %v447 = vsel %vm446, 0, %v445
    %v448 = vsub.s32 32, %v447
    %v449 = vshll.u32 %v440, %v447
    %v450 = vshrl.u32 %v432, %v448
    %v451 = vor.u32 %v449, %v450
    %v452 = vsub.s32 4294967266, %v447
    %v453 = vadd.s32 %v452, 127
    %v454 = vshll.u32 %v453, 23
    %v455 = vor.u32 4788187, %v454
    %v456 = vand.u32 2147483647, %v455
    %v458 = vcvt.s32.f32 %v451
    %v459 = vmul.f32 %v458, %v456
    %v460 = vxor.u32 %v459, 2147483648
    %v461 = vsel %vm340, %v460, %v459
    %v462 = vsub.s32 4, %v438
    %v463 = vsel %vm340, %v462, %v438
    %v464 = vsel %vm339, %v337, %v461
    %v465 = vsel %vm339, 0, %v463
    %v466 = vmul.f32 %v464, %v464
    %v467 = vmul.f32 %v466, -0.001358992
    %v468 = vadd.f32 %v467, 0.041655596
    %v469 = vmul.f32 %v466, %v468
    %v470 = vadd.f32 %v469, -0.4999988
    %v471 = vmul.f32 %v466, %v470
    %v472 = vadd.f32 1.0, %v471
    %v473 = vmul.f32 %v464, %v464
    %v474 = vmul.f32 %v473, -0.00019511016
    %v475 = vadd.f32 %v474, 0.008332121
    %v476 = vmul.f32 %v473, %v475
    %v477 = vadd.f32 %v476, -0.16666654
    %v478 = vmul.f32 %v473, %v477
    %v479 = vadd.f32 %v478, 1.0
    %v480 = vmul.f32 %v479, %v464
    %vm481 = vweird.f32 %v337
    %v482 = vadd.s32 %v465, 3
    %v483 = vand.u32 %v482, 3
    %vm484 = vcmp.lt.s32.totalorder %v483, 2
    %vm485 = vcmp.eq.s32.totalorder %v483, 0
    %v486 = vxor.u32 %v480, 2147483648
    %v487 = vsel %vm485, %v472, %v486
    %vm488 = vcmp.eq.s32.totalorder %v483, 2
    %v489 = vxor.u32 %v472, 2147483648
    %v490 = vsel %vm488, %v489, %v480
    %v491 = vsel %vm484, %v487, %v490
    %v492 = vsel %vm481, nan, %v491
    %s493 = scalar_lea.vmem [#allocation5], 1
    %494 = vst [vmem:[%s493] sm:$0x1] %v492
    %v495 = vand.u32 2147483647, %v337
    %vm496 = vcmp.le.f32.partialorder %v495, 0.7853982
    %vm497 = vcmp.lt.s32.totalorder %v337, 0
    %v498 = vand.u32 %v337, 2139095040
    %v499 = vshrl.u32 %v498, 23
    %v500 = vsub.s32 %v499, 127
    %v501 = vand.u32 2147483647, %v337
    %v502 = vand.u32 %v501, 8388607
    %v503 = vor.u32 %v502, 8388608
    %v504 = vsub.s32 0, %v503
    %v505 = vadd.s32 %v500, 1
    %vm506 = vcmp.gt.s32.totalorder %v505, 0
    %v507 = vsel %vm506, %v505, 0
    %v508 = vshrl.u32 %v507, 5
    %v509 = vand.u32 %v507, 31
    %v510 = vsub.s32 32, %v509
    %v511 = vshrl.u32 683565275, %v510
    %v512 = vshll.u32 683565275, %v509
    %v513 = vshrl.u32 2475754826, %v510
    %v514 = vor.u32 %v512, %v513
    %v515 = vshll.u32 2475754826, %v509
    %v516 = vshrl.u32 2131351028, %v510
    %v517 = vor.u32 %v515, %v516
    %v518 = vshll.u32 2131351028, %v509
    %v519 = vshrl.u32 2102212464, %v510
    %v520 = vor.u32 %v518, %v519
    %v521 = vshll.u32 2102212464, %v509
    %v522 = vshrl.u32 920167782, %v510
    %v523 = vor.u32 %v521, %v522
    %v524 = vshll.u32 920167782, %v509
    %v525 = vshrl.u32 1326507024, %v510
    %v526 = vor.u32 %v524, %v525
    %vm527 = vcmp.lt.s32.totalorder %v508, 1
    %vm528 = vcmp.lt.s32.totalorder %v508, 2
    %vm529 = vcmp.lt.s32.totalorder %v508, 3
    %vm530 = vcmp.lt.s32.totalorder %v508, 4
    %v531 = vsel %vm527, %v511, %v514
    %v532 = vsel %vm530, %v520, 2102212464
    %v533 = vsel %vm529, %v517, %v532
    %v534 = vsel %vm528, %v531, %v533
    %v535 = vsel %vm527, %v514, %v517
    %v536 = vsel %vm530, %v523, 920167782
    %v537 = vsel %vm529, %v520, %v536
    %v538 = vsel %vm528, %v535, %v537
    %v539 = vsel %vm527, %v517, %v520
    %v540 = vsel %vm530, %v526, 1326507024
    %v541 = vsel %vm529, %v523, %v540
    %v542 = vsel %vm528, %v539, %v541
    %v543 = vshll.u32 %v503, 8
    %v544 = vand.u32 %v543, 65535
    %v545 = vshrl.u32 %v543, 16
    %v546 = vand.u32 %v542, 65535
    %v547 = vshrl.u32 %v542, 16
    %v548 = vmul.u32 %v544, %v546
    %v549 = vmul.u32 %v544, %v547
    %v550 = vmul.u32 %v545, %v546
    %v551 = vmul.u32 %v545, %v547
    %v552 = vshll.u32 %v549, 16
    %v553 = vshrl.u32 %v549, 16
    %v554 = vshll.u32 %v550, 16
    %v555 = vshrl.u32 %v550, 16
    %vm556 = vc.u32 %v548, %v552
    %v557 = vsel %vm556, 1, 0
    %v558 = vadd.s32 %v548, %v552
    %v559 = vadd.s32 %v551, %v557
    %vm560 = vc.u32 %v558, %v554
    %v561 = vsel %vm560, 1, 0
    %v562 = vadd.s32 %v558, %v554
    %v563 = vadd.s32 %v559, %v561
    %v564 = vadd.s32 %v563, %v553
    %v565 = vadd.s32 %v564, %v555
    %v566 = vand.u32 %v543, 65535
    %v567 = vshrl.u32 %v543, 16
    %v568 = vand.u32 %v538, 65535
    %v569 = vshrl.u32 %v538, 16
    %v570 = vmul.u32 %v566, %v568
    %v571 = vmul.u32 %v566, %v569
    %v572 = vmul.u32 %v567, %v568
    %v573 = vmul.u32 %v567, %v569
    %v574 = vshll.u32 %v571, 16
    %v575 = vshrl.u32 %v571, 16
    %v576 = vshll.u32 %v572, 16
    %v577 = vshrl.u32 %v572, 16
    %vm578 = vc.u32 %v570, %v574
    %v579 = vsel %vm578, 1, 0
    %v580 = vadd.s32 %v570, %v574
    %v581 = vadd.s32 %v573, %v579
    %vm582 = vc.u32 %v580, %v576
    %v583 = vsel %vm582, 1, 0
    %v584 = vadd.s32 %v580, %v576
    %v585 = vadd.s32 %v581, %v583
    %v586 = vadd.s32 %v585, %v575
    %v587 = vadd.s32 %v586, %v577
    %v588 = vmul.u32 %v543, %v534
    %v589 = vadd.s32 %v565, %v584
    %vm590 = vc.u32 %v565, %v584
    %v591 = vadd.s32 %v587, 1
    %v592 = vsel %vm590, %v591, %v587
    %v593 = vadd.s32 %v588, %v592
    %v594 = vadd.s32 %v593, 536870912
    %v595 = vshrl.u32 %v594, 30
    %v596 = vshll.u32 %v595, 30
    %v597 = vsub.s32 %v593, %v596
    %vm598 = vcmp.lt.s32.totalorder %v597, 0
    %v599 = vsub.s32 0, %v597
    %v600 = vsel %vm598, %v599, %v597
    %v601 = vclz %v600
    %v602 = vsub.s32 %v601, 2
    %vm603 = vcmp.gt.s32.totalorder 0, %v602
    %v604 = vsel %vm603, 0, %v602
    %v605 = vsub.s32 32, %v604
    %v606 = vshll.u32 %v597, %v604
    %v607 = vshrl.u32 %v589, %v605
    %v608 = vor.u32 %v606, %v607
    %v609 = vsub.s32 4294967266, %v604
    %v610 = vadd.s32 %v609, 127
    %v611 = vshll.u32 %v610, 23
    %v612 = vor.u32 4788187, %v611
    %v613 = vand.u32 2147483647, %v612
    %v615 = vcvt.s32.f32 %v608
    %v616 = vmul.f32 %v615, %v613
    %v617 = vxor.u32 %v616, 2147483648
    %v618 = vsel %vm497, %v617, %v616
    %v619 = vsub.s32 4, %v595
    %v620 = vsel %vm497, %v619, %v595
    %v621 = vsel %vm496, %v337, %v618
    %v622 = vsel %vm496, 0, %v620
    %v623 = vmul.f32 %v621, %v621
    %v624 = vmul.f32 %v623, -0.001358992
    %v625 = vadd.f32 %v624, 0.041655596
    %v626 = vmul.f32 %v623, %v625
    %v627 = vadd.f32 %v626, -0.4999988
    %v628 = vmul.f32 %v623, %v627
    %v629 = vadd.f32 1.0, %v628
    %v630 = vmul.f32 %v621, %v621
    %v631 = vmul.f32 %v630, -0.00019511016
    %v632 = vadd.f32 %v631, 0.008332121
    %v633 = vmul.f32 %v630, %v632
    %v634 = vadd.f32 %v633, -0.16666654
    %v635 = vmul.f32 %v630, %v634
    %v636 = vadd.f32 %v635, 1.0
    %v637 = vmul.f32 %v636, %v621
    %vm638 = vweird.f32 %v337
    %v639 = vand.u32 %v622, 3
    %vm640 = vcmp.lt.s32.totalorder %v639, 2
    %vm641 = vcmp.eq.s32.totalorder %v639, 0
    %v642 = vxor.u32 %v637, 2147483648
    %v643 = vsel %vm641, %v629, %v642
    %vm644 = vcmp.eq.s32.totalorder %v639, 2
    %v645 = vxor.u32 %v629, 2147483648
    %v646 = vsel %vm644, %v645, %v637
    %v647 = vsel %vm640, %v643, %v646
    %v648 = vsel %vm638, nan, %v647
    %s649 = scalar_lea.vmem [#allocation5], 6
    %650 = vst [vmem:[%s649] sm:$0x1] %v648
    %v651 = vmul.f32 %v23, 6.2831855
    %v652 = vand.u32 2147483647, %v651
    %vm653 = vcmp.le.f32.partialorder %v652, 0.7853982
    %vm654 = vcmp.lt.s32.totalorder %v651, 0
    %v655 = vand.u32 %v651, 2139095040
    %v656 = vshrl.u32 %v655, 23
    %v657 = vsub.s32 %v656, 127
    %v658 = vand.u32 2147483647, %v651
    %v659 = vand.u32 %v658, 8388607
    %v660 = vor.u32 %v659, 8388608
    %v661 = vsub.s32 0, %v660
    %v662 = vadd.s32 %v657, 1
    %vm663 = vcmp.gt.s32.totalorder %v662, 0
    %v664 = vsel %vm663, %v662, 0
    %v665 = vshrl.u32 %v664, 5
    %v666 = vand.u32 %v664, 31
    %v667 = vsub.s32 32, %v666
    %v668 = vshrl.u32 683565275, %v667
    %v669 = vshll.u32 683565275, %v666
    %v670 = vshrl.u32 2475754826, %v667
    %v671 = vor.u32 %v669, %v670
    %v672 = vshll.u32 2475754826, %v666
    %v673 = vshrl.u32 2131351028, %v667
    %v674 = vor.u32 %v672, %v673
    %v675 = vshll.u32 2131351028, %v666
    %v676 = vshrl.u32 2102212464, %v667
    %v677 = vor.u32 %v675, %v676
    %v678 = vshll.u32 2102212464, %v666
    %v679 = vshrl.u32 920167782, %v667
    %v680 = vor.u32 %v678, %v679
    %v681 = vshll.u32 920167782, %v666
    %v682 = vshrl.u32 1326507024, %v667
    %v683 = vor.u32 %v681, %v682
    %vm684 = vcmp.lt.s32.totalorder %v665, 1
    %vm685 = vcmp.lt.s32.totalorder %v665, 2
    %vm686 = vcmp.lt.s32.totalorder %v665, 3
    %vm687 = vcmp.lt.s32.totalorder %v665, 4
    %v688 = vsel %vm684, %v668, %v671
    %v689 = vsel %vm687, %v677, 2102212464
    %v690 = vsel %vm686, %v674, %v689
    %v691 = vsel %vm685, %v688, %v690
    %v692 = vsel %vm684, %v671, %v674
    %v693 = vsel %vm687, %v680, 920167782
    %v694 = vsel %vm686, %v677, %v693
    %v695 = vsel %vm685, %v692, %v694
    %v696 = vsel %vm684, %v674, %v677
    %v697 = vsel %vm687, %v683, 1326507024
    %v698 = vsel %vm686, %v680, %v697
    %v699 = vsel %vm685, %v696, %v698
    %v700 = vshll.u32 %v660, 8
    %v701 = vand.u32 %v700, 65535
    %v702 = vshrl.u32 %v700, 16
    %v703 = vand.u32 %v699, 65535
    %v704 = vshrl.u32 %v699, 16
    %v705 = vmul.u32 %v701, %v703
    %v706 = vmul.u32 %v701, %v704
    %v707 = vmul.u32 %v702, %v703
    %v708 = vmul.u32 %v702, %v704
    %v709 = vshll.u32 %v706, 16
    %v710 = vshrl.u32 %v706, 16
    %v711 = vshll.u32 %v707, 16
    %v712 = vshrl.u32 %v707, 16
    %vm713 = vc.u32 %v705, %v709
    %v714 = vsel %vm713, 1, 0
    %v715 = vadd.s32 %v705, %v709
    %v716 = vadd.s32 %v708, %v714
    %vm717 = vc.u32 %v715, %v711
    %v718 = vsel %vm717, 1, 0
    %v719 = vadd.s32 %v715, %v711
    %v720 = vadd.s32 %v716, %v718
    %v721 = vadd.s32 %v720, %v710
    %v722 = vadd.s32 %v721, %v712
    %v723 = vand.u32 %v700, 65535
    %v724 = vshrl.u32 %v700, 16
    %v725 = vand.u32 %v695, 65535
    %v726 = vshrl.u32 %v695, 16
    %v727 = vmul.u32 %v723, %v725
    %v728 = vmul.u32 %v723, %v726
    %v729 = vmul.u32 %v724, %v725
    %v730 = vmul.u32 %v724, %v726
    %v731 = vshll.u32 %v728, 16
    %v732 = vshrl.u32 %v728, 16
    %v733 = vshll.u32 %v729, 16
    %v734 = vshrl.u32 %v729, 16
    %vm735 = vc.u32 %v727, %v731
    %v736 = vsel %vm735, 1, 0
    %v737 = vadd.s32 %v727, %v731
    %v738 = vadd.s32 %v730, %v736
    %vm739 = vc.u32 %v737, %v733
    %v740 = vsel %vm739, 1, 0
    %v741 = vadd.s32 %v737, %v733
    %v742 = vadd.s32 %v738, %v740
    %v743 = vadd.s32 %v742, %v732
    %v744 = vadd.s32 %v743, %v734
    %v745 = vmul.u32 %v700, %v691
    %v746 = vadd.s32 %v722, %v741
    %vm747 = vc.u32 %v722, %v741
    %v748 = vadd.s32 %v744, 1
    %v749 = vsel %vm747, %v748, %v744
    %v750 = vadd.s32 %v745, %v749
    %v751 = vadd.s32 %v750, 536870912
    %v752 = vshrl.u32 %v751, 30
    %v753 = vshll.u32 %v752, 30
    %v754 = vsub.s32 %v750, %v753
    %vm755 = vcmp.lt.s32.totalorder %v754, 0
    %v756 = vsub.s32 0, %v754
    %v757 = vsel %vm755, %v756, %v754
    %v758 = vclz %v757
    %v759 = vsub.s32 %v758, 2
    %vm760 = vcmp.gt.s32.totalorder 0, %v759
    %v761 = vsel %vm760, 0, %v759
    %v762 = vsub.s32 32, %v761
    %v763 = vshll.u32 %v754, %v761
    %v764 = vshrl.u32 %v746, %v762
    %v765 = vor.u32 %v763, %v764
    %v766 = vsub.s32 4294967266, %v761
    %v767 = vadd.s32 %v766, 127
    %v768 = vshll.u32 %v767, 23
    %v769 = vor.u32 4788187, %v768
    %v770 = vand.u32 2147483647, %v769
    %v772 = vcvt.s32.f32 %v765
    %v773 = vmul.f32 %v772, %v770
    %v774 = vxor.u32 %v773, 2147483648
    %v775 = vsel %vm654, %v774, %v773
    %v776 = vsub.s32 4, %v752
    %v777 = vsel %vm654, %v776, %v752
    %v778 = vsel %vm653, %v651, %v775
    %v779 = vsel %vm653, 0, %v777
    %v780 = vmul.f32 %v778, %v778
    %v781 = vmul.f32 %v780, -0.001358992
    %v782 = vadd.f32 %v781, 0.041655596
    %v783 = vmul.f32 %v780, %v782
    %v784 = vadd.f32 %v783, -0.4999988
    %v785 = vmul.f32 %v780, %v784
    %v786 = vadd.f32 1.0, %v785
    %v787 = vmul.f32 %v778, %v778
    %v788 = vmul.f32 %v787, -0.00019511016
    %v789 = vadd.f32 %v788, 0.008332121
    %v790 = vmul.f32 %v787, %v789
    %v791 = vadd.f32 %v790, -0.16666654
    %v792 = vmul.f32 %v787, %v791
    %v793 = vadd.f32 %v792, 1.0
    %v794 = vmul.f32 %v793, %v778
    %vm795 = vweird.f32 %v651
    %v796 = vadd.s32 %v779, 3
    %v797 = vand.u32 %v796, 3
    %vm798 = vcmp.lt.s32.totalorder %v797, 2
    %vm799 = vcmp.eq.s32.totalorder %v797, 0
    %v800 = vxor.u32 %v794, 2147483648
    %v801 = vsel %vm799, %v786, %v800
    %vm802 = vcmp.eq.s32.totalorder %v797, 2
    %v803 = vxor.u32 %v786, 2147483648
    %v804 = vsel %vm802, %v803, %v794
    %v805 = vsel %vm798, %v801, %v804
    %v806 = vsel %vm795, nan, %v805
    %s807 = scalar_lea.vmem [#allocation5], 2
    %808 = vst [vmem:[%s807] sm:$0x1] %v806
    %v809 = vand.u32 2147483647, %v651
    %vm810 = vcmp.le.f32.partialorder %v809, 0.7853982
    %vm811 = vcmp.lt.s32.totalorder %v651, 0
    %v812 = vand.u32 %v651, 2139095040
    %v813 = vshrl.u32 %v812, 23
    %v814 = vsub.s32 %v813, 127
    %v815 = vand.u32 2147483647, %v651
    %v816 = vand.u32 %v815, 8388607
    %v817 = vor.u32 %v816, 8388608
    %v818 = vsub.s32 0, %v817
    %v819 = vadd.s32 %v814, 1
    %vm820 = vcmp.gt.s32.totalorder %v819, 0
    %v821 = vsel %vm820, %v819, 0
    %v822 = vshrl.u32 %v821, 5
    %v823 = vand.u32 %v821, 31
    %v824 = vsub.s32 32, %v823
    %v825 = vshrl.u32 683565275, %v824
    %v826 = vshll.u32 683565275, %v823
    %v827 = vshrl.u32 2475754826, %v824
    %v828 = vor.u32 %v826, %v827
    %v829 = vshll.u32 2475754826, %v823
    %v830 = vshrl.u32 2131351028, %v824
    %v831 = vor.u32 %v829, %v830
    %v832 = vshll.u32 2131351028, %v823
    %v833 = vshrl.u32 2102212464, %v824
    %v834 = vor.u32 %v832, %v833
    %v835 = vshll.u32 2102212464, %v823
    %v836 = vshrl.u32 920167782, %v824
    %v837 = vor.u32 %v835, %v836
    %v838 = vshll.u32 920167782, %v823
    %v839 = vshrl.u32 1326507024, %v824
    %v840 = vor.u32 %v838, %v839
    %vm841 = vcmp.lt.s32.totalorder %v822, 1
    %vm842 = vcmp.lt.s32.totalorder %v822, 2
    %vm843 = vcmp.lt.s32.totalorder %v822, 3
    %vm844 = vcmp.lt.s32.totalorder %v822, 4
    %v845 = vsel %vm841, %v825, %v828
    %v846 = vsel %vm844, %v834, 2102212464
    %v847 = vsel %vm843, %v831, %v846
    %v848 = vsel %vm842, %v845, %v847
    %v849 = vsel %vm841, %v828, %v831
    %v850 = vsel %vm844, %v837, 920167782
    %v851 = vsel %vm843, %v834, %v850
    %v852 = vsel %vm842, %v849, %v851
    %v853 = vsel %vm841, %v831, %v834
    %v854 = vsel %vm844, %v840, 1326507024
    %v855 = vsel %vm843, %v837, %v854
    %v856 = vsel %vm842, %v853, %v855
    %v857 = vshll.u32 %v817, 8
    %v858 = vand.u32 %v857, 65535
    %v859 = vshrl.u32 %v857, 16
    %v860 = vand.u32 %v856, 65535
    %v861 = vshrl.u32 %v856, 16
    %v862 = vmul.u32 %v858, %v860
    %v863 = vmul.u32 %v858, %v861
    %v864 = vmul.u32 %v859, %v860
    %v865 = vmul.u32 %v859, %v861
    %v866 = vshll.u32 %v863, 16
    %v867 = vshrl.u32 %v863, 16
    %v868 = vshll.u32 %v864, 16
    %v869 = vshrl.u32 %v864, 16
    %vm870 = vc.u32 %v862, %v866
    %v871 = vsel %vm870, 1, 0
    %v872 = vadd.s32 %v862, %v866
    %v873 = vadd.s32 %v865, %v871
    %vm874 = vc.u32 %v872, %v868
    %v875 = vsel %vm874, 1, 0
    %v876 = vadd.s32 %v872, %v868
    %v877 = vadd.s32 %v873, %v875
    %v878 = vadd.s32 %v877, %v867
    %v879 = vadd.s32 %v878, %v869
    %v880 = vand.u32 %v857, 65535
    %v881 = vshrl.u32 %v857, 16
    %v882 = vand.u32 %v852, 65535
    %v883 = vshrl.u32 %v852, 16
    %v884 = vmul.u32 %v880, %v882
    %v885 = vmul.u32 %v880, %v883
    %v886 = vmul.u32 %v881, %v882
    %v887 = vmul.u32 %v881, %v883
    %v888 = vshll.u32 %v885, 16
    %v889 = vshrl.u32 %v885, 16
    %v890 = vshll.u32 %v886, 16
    %v891 = vshrl.u32 %v886, 16
    %vm892 = vc.u32 %v884, %v888
    %v893 = vsel %vm892, 1, 0
    %v894 = vadd.s32 %v884, %v888
    %v895 = vadd.s32 %v887, %v893
    %vm896 = vc.u32 %v894, %v890
    %v897 = vsel %vm896, 1, 0
    %v898 = vadd.s32 %v894, %v890
    %v899 = vadd.s32 %v895, %v897
    %v900 = vadd.s32 %v899, %v889
    %v901 = vadd.s32 %v900, %v891
    %v902 = vmul.u32 %v857, %v848
    %v903 = vadd.s32 %v879, %v898
    %vm904 = vc.u32 %v879, %v898
    %v905 = vadd.s32 %v901, 1
    %v906 = vsel %vm904, %v905, %v901
    %v907 = vadd.s32 %v902, %v906
    %v908 = vadd.s32 %v907, 536870912
    %v909 = vshrl.u32 %v908, 30
    %v910 = vshll.u32 %v909, 30
    %v911 = vsub.s32 %v907, %v910
    %vm912 = vcmp.lt.s32.totalorder %v911, 0
    %v913 = vsub.s32 0, %v911
    %v914 = vsel %vm912, %v913, %v911
    %v915 = vclz %v914
    %v916 = vsub.s32 %v915, 2
    %vm917 = vcmp.gt.s32.totalorder 0, %v916
    %v918 = vsel %vm917, 0, %v916
    %v919 = vsub.s32 32, %v918
    %v920 = vshll.u32 %v911, %v918
    %v921 = vshrl.u32 %v903, %v919
    %v922 = vor.u32 %v920, %v921
    %v923 = vsub.s32 4294967266, %v918
    %v924 = vadd.s32 %v923, 127
    %v925 = vshll.u32 %v924, 23
    %v926 = vor.u32 4788187, %v925
    %v927 = vand.u32 2147483647, %v926
    %v929 = vcvt.s32.f32 %v922
    %v930 = vmul.f32 %v929, %v927
    %v931 = vxor.u32 %v930, 2147483648
    %v932 = vsel %vm811, %v931, %v930
    %v933 = vsub.s32 4, %v909
    %v934 = vsel %vm811, %v933, %v909
    %v935 = vsel %vm810, %v651, %v932
    %v936 = vsel %vm810, 0, %v934
    %v937 = vmul.f32 %v935, %v935
    %v938 = vmul.f32 %v937, -0.001358992
    %v939 = vadd.f32 %v938, 0.041655596
    %v940 = vmul.f32 %v937, %v939
    %v941 = vadd.f32 %v940, -0.4999988
    %v942 = vmul.f32 %v937, %v941
    %v943 = vadd.f32 1.0, %v942
    %v944 = vmul.f32 %v935, %v935
    %v945 = vmul.f32 %v944, -0.00019511016
    %v946 = vadd.f32 %v945, 0.008332121
    %v947 = vmul.f32 %v944, %v946
    %v948 = vadd.f32 %v947, -0.16666654
    %v949 = vmul.f32 %v944, %v948
    %v950 = vadd.f32 %v949, 1.0
    %v951 = vmul.f32 %v950, %v935
    %vm952 = vweird.f32 %v651
    %v953 = vand.u32 %v936, 3
    %vm954 = vcmp.lt.s32.totalorder %v953, 2
    %vm955 = vcmp.eq.s32.totalorder %v953, 0
    %v956 = vxor.u32 %v951, 2147483648
    %v957 = vsel %vm955, %v943, %v956
    %vm958 = vcmp.eq.s32.totalorder %v953, 2
    %v959 = vxor.u32 %v943, 2147483648
    %v960 = vsel %vm958, %v959, %v951
    %v961 = vsel %vm954, %v957, %v960
    %v962 = vsel %vm952, nan, %v961
    %s963 = scalar_lea.vmem [#allocation5], 7
    %964 = vst [vmem:[%s963] sm:$0x1] %v962
    %v965 = vmul.f32 %v23, 1.9869176
    %v966 = vand.u32 2147483647, %v965
    %vm967 = vcmp.le.f32.partialorder %v966, 0.7853982
    %vm968 = vcmp.lt.s32.totalorder %v965, 0
    %v969 = vand.u32 %v965, 2139095040
    %v970 = vshrl.u32 %v969, 23
    %v971 = vsub.s32 %v970, 127
    %v972 = vand.u32 2147483647, %v965
    %v973 = vand.u32 %v972, 8388607
    %v974 = vor.u32 %v973, 8388608
    %v975 = vsub.s32 0, %v974
    %v976 = vadd.s32 %v971, 1
    %vm977 = vcmp.gt.s32.totalorder %v976, 0
    %v978 = vsel %vm977, %v976, 0
    %v979 = vshrl.u32 %v978, 5
    %v980 = vand.u32 %v978, 31
    %v981 = vsub.s32 32, %v980
    %v982 = vshrl.u32 683565275, %v981
    %v983 = vshll.u32 683565275, %v980
    %v984 = vshrl.u32 2475754826, %v981
    %v985 = vor.u32 %v983, %v984
    %v986 = vshll.u32 2475754826, %v980
    %v987 = vshrl.u32 2131351028, %v981
    %v988 = vor.u32 %v986, %v987
    %v989 = vshll.u32 2131351028, %v980
    %v990 = vshrl.u32 2102212464, %v981
    %v991 = vor.u32 %v989, %v990
    %v992 = vshll.u32 2102212464, %v980
    %v993 = vshrl.u32 920167782, %v981
    %v994 = vor.u32 %v992, %v993
    %v995 = vshll.u32 920167782, %v980
    %v996 = vshrl.u32 1326507024, %v981
    %v997 = vor.u32 %v995, %v996
    %vm998 = vcmp.lt.s32.totalorder %v979, 1
    %vm999 = vcmp.lt.s32.totalorder %v979, 2
    %vm1000 = vcmp.lt.s32.totalorder %v979, 3
    %vm1001 = vcmp.lt.s32.totalorder %v979, 4
    %v1002 = vsel %vm998, %v982, %v985
    %v1003 = vsel %vm1001, %v991, 2102212464
    %v1004 = vsel %vm1000, %v988, %v1003
    %v1005 = vsel %vm999, %v1002, %v1004
    %v1006 = vsel %vm998, %v985, %v988
    %v1007 = vsel %vm1001, %v994, 920167782
    %v1008 = vsel %vm1000, %v991, %v1007
    %v1009 = vsel %vm999, %v1006, %v1008
    %v1010 = vsel %vm998, %v988, %v991
    %v1011 = vsel %vm1001, %v997, 1326507024
    %v1012 = vsel %vm1000, %v994, %v1011
    %v1013 = vsel %vm999, %v1010, %v1012
    %v1014 = vshll.u32 %v974, 8
    %v1015 = vand.u32 %v1014, 65535
    %v1016 = vshrl.u32 %v1014, 16
    %v1017 = vand.u32 %v1013, 65535
    %v1018 = vshrl.u32 %v1013, 16
    %v1019 = vmul.u32 %v1015, %v1017
    %v1020 = vmul.u32 %v1015, %v1018
    %v1021 = vmul.u32 %v1016, %v1017
    %v1022 = vmul.u32 %v1016, %v1018
    %v1023 = vshll.u32 %v1020, 16
    %v1024 = vshrl.u32 %v1020, 16
    %v1025 = vshll.u32 %v1021, 16
    %v1026 = vshrl.u32 %v1021, 16
    %vm1027 = vc.u32 %v1019, %v1023
    %v1028 = vsel %vm1027, 1, 0
    %v1029 = vadd.s32 %v1019, %v1023
    %v1030 = vadd.s32 %v1022, %v1028
    %vm1031 = vc.u32 %v1029, %v1025
    %v1032 = vsel %vm1031, 1, 0
    %v1033 = vadd.s32 %v1029, %v1025
    %v1034 = vadd.s32 %v1030, %v1032
    %v1035 = vadd.s32 %v1034, %v1024
    %v1036 = vadd.s32 %v1035, %v1026
    %v1037 = vand.u32 %v1014, 65535
    %v1038 = vshrl.u32 %v1014, 16
    %v1039 = vand.u32 %v1009, 65535
    %v1040 = vshrl.u32 %v1009, 16
    %v1041 = vmul.u32 %v1037, %v1039
    %v1042 = vmul.u32 %v1037, %v1040
    %v1043 = vmul.u32 %v1038, %v1039
    %v1044 = vmul.u32 %v1038, %v1040
    %v1045 = vshll.u32 %v1042, 16
    %v1046 = vshrl.u32 %v1042, 16
    %v1047 = vshll.u32 %v1043, 16
    %v1048 = vshrl.u32 %v1043, 16
    %vm1049 = vc.u32 %v1041, %v1045
    %v1050 = vsel %vm1049, 1, 0
    %v1051 = vadd.s32 %v1041, %v1045
    %v1052 = vadd.s32 %v1044, %v1050
    %vm1053 = vc.u32 %v1051, %v1047
    %v1054 = vsel %vm1053, 1, 0
    %v1055 = vadd.s32 %v1051, %v1047
    %v1056 = vadd.s32 %v1052, %v1054
    %v1057 = vadd.s32 %v1056, %v1046
    %v1058 = vadd.s32 %v1057, %v1048
    %v1059 = vmul.u32 %v1014, %v1005
    %v1060 = vadd.s32 %v1036, %v1055
    %vm1061 = vc.u32 %v1036, %v1055
    %v1062 = vadd.s32 %v1058, 1
    %v1063 = vsel %vm1061, %v1062, %v1058
    %v1064 = vadd.s32 %v1059, %v1063
    %v1065 = vadd.s32 %v1064, 536870912
    %v1066 = vshrl.u32 %v1065, 30
    %v1067 = vshll.u32 %v1066, 30
    %v1068 = vsub.s32 %v1064, %v1067
    %vm1069 = vcmp.lt.s32.totalorder %v1068, 0
    %v1070 = vsub.s32 0, %v1068
    %v1071 = vsel %vm1069, %v1070, %v1068
    %v1072 = vclz %v1071
    %v1073 = vsub.s32 %v1072, 2
    %vm1074 = vcmp.gt.s32.totalorder 0, %v1073
    %v1075 = vsel %vm1074, 0, %v1073
    %v1076 = vsub.s32 32, %v1075
    %v1077 = vshll.u32 %v1068, %v1075
    %v1078 = vshrl.u32 %v1060, %v1076
    %v1079 = vor.u32 %v1077, %v1078
    %v1080 = vsub.s32 4294967266, %v1075
    %v1081 = vadd.s32 %v1080, 127
    %v1082 = vshll.u32 %v1081, 23
    %v1083 = vor.u32 4788187, %v1082
    %v1084 = vand.u32 2147483647, %v1083
    %v1086 = vcvt.s32.f32 %v1079
    %v1087 = vmul.f32 %v1086, %v1084
    %v1088 = vxor.u32 %v1087, 2147483648
    %v1089 = vsel %vm968, %v1088, %v1087
    %v1090 = vsub.s32 4, %v1066
    %v1091 = vsel %vm968, %v1090, %v1066
    %v1092 = vsel %vm967, %v965, %v1089
    %v1093 = vsel %vm967, 0, %v1091
    %v1094 = vmul.f32 %v1092, %v1092
    %v1095 = vmul.f32 %v1094, -0.001358992
    %v1096 = vadd.f32 %v1095, 0.041655596
    %v1097 = vmul.f32 %v1094, %v1096
    %v1098 = vadd.f32 %v1097, -0.4999988
    %v1099 = vmul.f32 %v1094, %v1098
    %v1100 = vadd.f32 1.0, %v1099
    %v1101 = vmul.f32 %v1092, %v1092
    %v1102 = vmul.f32 %v1101, -0.00019511016
    %v1103 = vadd.f32 %v1102, 0.008332121
    %v1104 = vmul.f32 %v1101, %v1103
    %v1105 = vadd.f32 %v1104, -0.16666654
    %v1106 = vmul.f32 %v1101, %v1105
    %v1107 = vadd.f32 %v1106, 1.0
    %v1108 = vmul.f32 %v1107, %v1092
    %vm1109 = vweird.f32 %v965
    %v1110 = vadd.s32 %v1093, 3
    %v1111 = vand.u32 %v1110, 3
    %vm1112 = vcmp.lt.s32.totalorder %v1111, 2
    %vm1113 = vcmp.eq.s32.totalorder %v1111, 0
    %v1114 = vxor.u32 %v1108, 2147483648
    %v1115 = vsel %vm1113, %v1100, %v1114
    %vm1116 = vcmp.eq.s32.totalorder %v1111, 2
    %v1117 = vxor.u32 %v1100, 2147483648
    %v1118 = vsel %vm1116, %v1117, %v1108
    %v1119 = vsel %vm1112, %v1115, %v1118
    %v1120 = vsel %vm1109, nan, %v1119
    %s1121 = scalar_lea.vmem [#allocation5], 3
    %1122 = vst [vmem:[%s1121] sm:$0x1] %v1120
    %v1123 = vand.u32 2147483647, %v965
    %vm1124 = vcmp.le.f32.partialorder %v1123, 0.7853982
    %vm1125 = vcmp.lt.s32.totalorder %v965, 0
    %v1126 = vand.u32 %v965, 2139095040
    %v1127 = vshrl.u32 %v1126, 23
    %v1128 = vsub.s32 %v1127, 127
    %v1129 = vand.u32 2147483647, %v965
    %v1130 = vand.u32 %v1129, 8388607
    %v1131 = vor.u32 %v1130, 8388608
    %v1132 = vsub.s32 0, %v1131
    %v1133 = vadd.s32 %v1128, 1
    %vm1134 = vcmp.gt.s32.totalorder %v1133, 0
    %v1135 = vsel %vm1134, %v1133, 0
    %v1136 = vshrl.u32 %v1135, 5
    %v1137 = vand.u32 %v1135, 31
    %v1138 = vsub.s32 32, %v1137
    %v1139 = vshrl.u32 683565275, %v1138
    %v1140 = vshll.u32 683565275, %v1137
    %v1141 = vshrl.u32 2475754826, %v1138
    %v1142 = vor.u32 %v1140, %v1141
    %v1143 = vshll.u32 2475754826, %v1137
    %v1144 = vshrl.u32 2131351028, %v1138
    %v1145 = vor.u32 %v1143, %v1144
    %v1146 = vshll.u32 2131351028, %v1137
    %v1147 = vshrl.u32 2102212464, %v1138
    %v1148 = vor.u32 %v1146, %v1147
    %v1149 = vshll.u32 2102212464, %v1137
    %v1150 = vshrl.u32 920167782, %v1138
    %v1151 = vor.u32 %v1149, %v1150
    %v1152 = vshll.u32 920167782, %v1137
    %v1153 = vshrl.u32 1326507024, %v1138
    %v1154 = vor.u32 %v1152, %v1153
    %vm1155 = vcmp.lt.s32.totalorder %v1136, 1
    %vm1156 = vcmp.lt.s32.totalorder %v1136, 2
    %vm1157 = vcmp.lt.s32.totalorder %v1136, 3
    %vm1158 = vcmp.lt.s32.totalorder %v1136, 4
    %v1159 = vsel %vm1155, %v1139, %v1142
    %v1160 = vsel %vm1158, %v1148, 2102212464
    %v1161 = vsel %vm1157, %v1145, %v1160
    %v1162 = vsel %vm1156, %v1159, %v1161
    %v1163 = vsel %vm1155, %v1142, %v1145
    %v1164 = vsel %vm1158, %v1151, 920167782
    %v1165 = vsel %vm1157, %v1148, %v1164
    %v1166 = vsel %vm1156, %v1163, %v1165
    %v1167 = vsel %vm1155, %v1145, %v1148
    %v1168 = vsel %vm1158, %v1154, 1326507024
    %v1169 = vsel %vm1157, %v1151, %v1168
    %v1170 = vsel %vm1156, %v1167, %v1169
    %v1171 = vshll.u32 %v1131, 8
    %v1172 = vand.u32 %v1171, 65535
    %v1173 = vshrl.u32 %v1171, 16
    %v1174 = vand.u32 %v1170, 65535
    %v1175 = vshrl.u32 %v1170, 16
    %v1176 = vmul.u32 %v1172, %v1174
    %v1177 = vmul.u32 %v1172, %v1175
    %v1178 = vmul.u32 %v1173, %v1174
    %v1179 = vmul.u32 %v1173, %v1175
    %v1180 = vshll.u32 %v1177, 16
    %v1181 = vshrl.u32 %v1177, 16
    %v1182 = vshll.u32 %v1178, 16
    %v1183 = vshrl.u32 %v1178, 16
    %vm1184 = vc.u32 %v1176, %v1180
    %v1185 = vsel %vm1184, 1, 0
    %v1186 = vadd.s32 %v1176, %v1180
    %v1187 = vadd.s32 %v1179, %v1185
    %vm1188 = vc.u32 %v1186, %v1182
    %v1189 = vsel %vm1188, 1, 0
    %v1190 = vadd.s32 %v1186, %v1182
    %v1191 = vadd.s32 %v1187, %v1189
    %v1192 = vadd.s32 %v1191, %v1181
    %v1193 = vadd.s32 %v1192, %v1183
    %v1194 = vand.u32 %v1171, 65535
    %v1195 = vshrl.u32 %v1171, 16
    %v1196 = vand.u32 %v1166, 65535
    %v1197 = vshrl.u32 %v1166, 16
    %v1198 = vmul.u32 %v1194, %v1196
    %v1199 = vmul.u32 %v1194, %v1197
    %v1200 = vmul.u32 %v1195, %v1196
    %v1201 = vmul.u32 %v1195, %v1197
    %v1202 = vshll.u32 %v1199, 16
    %v1203 = vshrl.u32 %v1199, 16
    %v1204 = vshll.u32 %v1200, 16
    %v1205 = vshrl.u32 %v1200, 16
    %vm1206 = vc.u32 %v1198, %v1202
    %v1207 = vsel %vm1206, 1, 0
    %v1208 = vadd.s32 %v1198, %v1202
    %v1209 = vadd.s32 %v1201, %v1207
    %vm1210 = vc.u32 %v1208, %v1204
    %v1211 = vsel %vm1210, 1, 0
    %v1212 = vadd.s32 %v1208, %v1204
    %v1213 = vadd.s32 %v1209, %v1211
    %v1214 = vadd.s32 %v1213, %v1203
    %v1215 = vadd.s32 %v1214, %v1205
    %v1216 = vmul.u32 %v1171, %v1162
    %v1217 = vadd.s32 %v1193, %v1212
    %vm1218 = vc.u32 %v1193, %v1212
    %v1219 = vadd.s32 %v1215, 1
    %v1220 = vsel %vm1218, %v1219, %v1215
    %v1221 = vadd.s32 %v1216, %v1220
    %v1222 = vadd.s32 %v1221, 536870912
    %v1223 = vshrl.u32 %v1222, 30
    %v1224 = vshll.u32 %v1223, 30
    %v1225 = vsub.s32 %v1221, %v1224
    %vm1226 = vcmp.lt.s32.totalorder %v1225, 0
    %v1227 = vsub.s32 0, %v1225
    %v1228 = vsel %vm1226, %v1227, %v1225
    %v1229 = vclz %v1228
    %v1230 = vsub.s32 %v1229, 2
    %vm1231 = vcmp.gt.s32.totalorder 0, %v1230
    %v1232 = vsel %vm1231, 0, %v1230
    %v1233 = vsub.s32 32, %v1232
    %v1234 = vshll.u32 %v1225, %v1232
    %v1235 = vshrl.u32 %v1217, %v1233
    %v1236 = vor.u32 %v1234, %v1235
    %v1237 = vsub.s32 4294967266, %v1232
    %v1238 = vadd.s32 %v1237, 127
    %v1239 = vshll.u32 %v1238, 23
    %v1240 = vor.u32 4788187, %v1239
    %v1241 = vand.u32 2147483647, %v1240
    %v1243 = vcvt.s32.f32 %v1236
    %v1244 = vmul.f32 %v1243, %v1241
    %v1245 = vxor.u32 %v1244, 2147483648
    %v1246 = vsel %vm1125, %v1245, %v1244
    %v1247 = vsub.s32 4, %v1223
    %v1248 = vsel %vm1125, %v1247, %v1223
    %v1249 = vsel %vm1124, %v965, %v1246
    %v1250 = vsel %vm1124, 0, %v1248
    %v1251 = vmul.f32 %v1249, %v1249
    %v1252 = vmul.f32 %v1251, -0.001358992
    %v1253 = vadd.f32 %v1252, 0.041655596
    %v1254 = vmul.f32 %v1251, %v1253
    %v1255 = vadd.f32 %v1254, -0.4999988
    %v1256 = vmul.f32 %v1251, %v1255
    %v1257 = vadd.f32 1.0, %v1256
    %v1258 = vmul.f32 %v1249, %v1249
    %v1259 = vmul.f32 %v1258, -0.00019511016
    %v1260 = vadd.f32 %v1259, 0.008332121
    %v1261 = vmul.f32 %v1258, %v1260
    %v1262 = vadd.f32 %v1261, -0.16666654
    %v1263 = vmul.f32 %v1258, %v1262
    %v1264 = vadd.f32 %v1263, 1.0
    %v1265 = vmul.f32 %v1264, %v1249
    %vm1266 = vweird.f32 %v965
    %v1267 = vand.u32 %v1250, 3
    %vm1268 = vcmp.lt.s32.totalorder %v1267, 2
    %vm1269 = vcmp.eq.s32.totalorder %v1267, 0
    %v1270 = vxor.u32 %v1265, 2147483648
    %v1271 = vsel %vm1269, %v1257, %v1270
    %vm1272 = vcmp.eq.s32.totalorder %v1267, 2
    %v1273 = vxor.u32 %v1257, 2147483648
    %v1274 = vsel %vm1272, %v1273, %v1265
    %v1275 = vsel %vm1268, %v1271, %v1274
    %v1276 = vsel %vm1266, nan, %v1275
    %s1277 = scalar_lea.vmem [#allocation5], 8
    %1278 = vst [vmem:[%s1277] sm:$0x1] %v1276
    %v1279 = vmul.f32 %v23, 0.62831855
    %v1280 = vand.u32 2147483647, %v1279
    %vm1281 = vcmp.le.f32.partialorder %v1280, 0.7853982
    %vm1282 = vcmp.lt.s32.totalorder %v1279, 0
    %v1283 = vand.u32 %v1279, 2139095040
    %v1284 = vshrl.u32 %v1283, 23
    %v1285 = vsub.s32 %v1284, 127
    %v1286 = vand.u32 2147483647, %v1279
    %v1287 = vand.u32 %v1286, 8388607
    %v1288 = vor.u32 %v1287, 8388608
    %v1289 = vsub.s32 0, %v1288
    %v1290 = vadd.s32 %v1285, 1
    %vm1291 = vcmp.gt.s32.totalorder %v1290, 0
    %v1292 = vsel %vm1291, %v1290, 0
    %v1293 = vshrl.u32 %v1292, 5
    %v1294 = vand.u32 %v1292, 31
    %v1295 = vsub.s32 32, %v1294
    %v1296 = vshrl.u32 683565275, %v1295
    %v1297 = vshll.u32 683565275, %v1294
    %v1298 = vshrl.u32 2475754826, %v1295
    %v1299 = vor.u32 %v1297, %v1298
    %v1300 = vshll.u32 2475754826, %v1294
    %v1301 = vshrl.u32 2131351028, %v1295
    %v1302 = vor.u32 %v1300, %v1301
    %v1303 = vshll.u32 2131351028, %v1294
    %v1304 = vshrl.u32 2102212464, %v1295
    %v1305 = vor.u32 %v1303, %v1304
    %v1306 = vshll.u32 2102212464, %v1294
    %v1307 = vshrl.u32 920167782, %v1295
    %v1308 = vor.u32 %v1306, %v1307
    %v1309 = vshll.u32 920167782, %v1294
    %v1310 = vshrl.u32 1326507024, %v1295
    %v1311 = vor.u32 %v1309, %v1310
    %vm1312 = vcmp.lt.s32.totalorder %v1293, 1
    %vm1313 = vcmp.lt.s32.totalorder %v1293, 2
    %vm1314 = vcmp.lt.s32.totalorder %v1293, 3
    %vm1315 = vcmp.lt.s32.totalorder %v1293, 4
    %v1316 = vsel %vm1312, %v1296, %v1299
    %v1317 = vsel %vm1315, %v1305, 2102212464
    %v1318 = vsel %vm1314, %v1302, %v1317
    %v1319 = vsel %vm1313, %v1316, %v1318
    %v1320 = vsel %vm1312, %v1299, %v1302
    %v1321 = vsel %vm1315, %v1308, 920167782
    %v1322 = vsel %vm1314, %v1305, %v1321
    %v1323 = vsel %vm1313, %v1320, %v1322
    %v1324 = vsel %vm1312, %v1302, %v1305
    %v1325 = vsel %vm1315, %v1311, 1326507024
    %v1326 = vsel %vm1314, %v1308, %v1325
    %v1327 = vsel %vm1313, %v1324, %v1326
    %v1328 = vshll.u32 %v1288, 8
    %v1329 = vand.u32 %v1328, 65535
    %v1330 = vshrl.u32 %v1328, 16
    %v1331 = vand.u32 %v1327, 65535
    %v1332 = vshrl.u32 %v1327, 16
    %v1333 = vmul.u32 %v1329, %v1331
    %v1334 = vmul.u32 %v1329, %v1332
    %v1335 = vmul.u32 %v1330, %v1331
    %v1336 = vmul.u32 %v1330, %v1332
    %v1337 = vshll.u32 %v1334, 16
    %v1338 = vshrl.u32 %v1334, 16
    %v1339 = vshll.u32 %v1335, 16
    %v1340 = vshrl.u32 %v1335, 16
    %vm1341 = vc.u32 %v1333, %v1337
    %v1342 = vsel %vm1341, 1, 0
    %v1343 = vadd.s32 %v1333, %v1337
    %v1344 = vadd.s32 %v1336, %v1342
    %vm1345 = vc.u32 %v1343, %v1339
    %v1346 = vsel %vm1345, 1, 0
    %v1347 = vadd.s32 %v1343, %v1339
    %v1348 = vadd.s32 %v1344, %v1346
    %v1349 = vadd.s32 %v1348, %v1338
    %v1350 = vadd.s32 %v1349, %v1340
    %v1351 = vand.u32 %v1328, 65535
    %v1352 = vshrl.u32 %v1328, 16
    %v1353 = vand.u32 %v1323, 65535
    %v1354 = vshrl.u32 %v1323, 16
    %v1355 = vmul.u32 %v1351, %v1353
    %v1356 = vmul.u32 %v1351, %v1354
    %v1357 = vmul.u32 %v1352, %v1353
    %v1358 = vmul.u32 %v1352, %v1354
    %v1359 = vshll.u32 %v1356, 16
    %v1360 = vshrl.u32 %v1356, 16
    %v1361 = vshll.u32 %v1357, 16
    %v1362 = vshrl.u32 %v1357, 16
    %vm1363 = vc.u32 %v1355, %v1359
    %v1364 = vsel %vm1363, 1, 0
    %v1365 = vadd.s32 %v1355, %v1359
    %v1366 = vadd.s32 %v1358, %v1364
    %vm1367 = vc.u32 %v1365, %v1361
    %v1368 = vsel %vm1367, 1, 0
    %v1369 = vadd.s32 %v1365, %v1361
    %v1370 = vadd.s32 %v1366, %v1368
    %v1371 = vadd.s32 %v1370, %v1360
    %v1372 = vadd.s32 %v1371, %v1362
    %v1373 = vmul.u32 %v1328, %v1319
    %v1374 = vadd.s32 %v1350, %v1369
    %vm1375 = vc.u32 %v1350, %v1369
    %v1376 = vadd.s32 %v1372, 1
    %v1377 = vsel %vm1375, %v1376, %v1372
    %v1378 = vadd.s32 %v1373, %v1377
    %v1379 = vadd.s32 %v1378, 536870912
    %v1380 = vshrl.u32 %v1379, 30
    %v1381 = vshll.u32 %v1380, 30
    %v1382 = vsub.s32 %v1378, %v1381
    %vm1383 = vcmp.lt.s32.totalorder %v1382, 0
    %v1384 = vsub.s32 0, %v1382
    %v1385 = vsel %vm1383, %v1384, %v1382
    %v1386 = vclz %v1385
    %v1387 = vsub.s32 %v1386, 2
    %vm1388 = vcmp.gt.s32.totalorder 0, %v1387
    %v1389 = vsel %vm1388, 0, %v1387
    %v1390 = vsub.s32 32, %v1389
    %v1391 = vshll.u32 %v1382, %v1389
    %v1392 = vshrl.u32 %v1374, %v1390
    %v1393 = vor.u32 %v1391, %v1392
    %v1394 = vsub.s32 4294967266, %v1389
    %v1395 = vadd.s32 %v1394, 127
    %v1396 = vshll.u32 %v1395, 23
    %v1397 = vor.u32 4788187, %v1396
    %v1398 = vand.u32 2147483647, %v1397
    %v1400 = vcvt.s32.f32 %v1393
    %v1401 = vmul.f32 %v1400, %v1398
    %v1402 = vxor.u32 %v1401, 2147483648
    %v1403 = vsel %vm1282, %v1402, %v1401
    %v1404 = vsub.s32 4, %v1380
    %v1405 = vsel %vm1282, %v1404, %v1380
    %v1406 = vsel %vm1281, %v1279, %v1403
    %v1407 = vsel %vm1281, 0, %v1405
    %v1408 = vmul.f32 %v1406, %v1406
    %v1409 = vmul.f32 %v1408, -0.001358992
    %v1410 = vadd.f32 %v1409, 0.041655596
    %v1411 = vmul.f32 %v1408, %v1410
    %v1412 = vadd.f32 %v1411, -0.4999988
    %v1413 = vmul.f32 %v1408, %v1412
    %v1414 = vadd.f32 1.0, %v1413
    %v1415 = vmul.f32 %v1406, %v1406
    %v1416 = vmul.f32 %v1415, -0.00019511016
    %v1417 = vadd.f32 %v1416, 0.008332121
    %v1418 = vmul.f32 %v1415, %v1417
    %v1419 = vadd.f32 %v1418, -0.16666654
    %v1420 = vmul.f32 %v1415, %v1419
    %v1421 = vadd.f32 %v1420, 1.0
    %v1422 = vmul.f32 %v1421, %v1406
    %vm1423 = vweird.f32 %v1279
    %v1424 = vadd.s32 %v1407, 3
    %v1425 = vand.u32 %v1424, 3
    %vm1426 = vcmp.lt.s32.totalorder %v1425, 2
    %vm1427 = vcmp.eq.s32.totalorder %v1425, 0
    %v1428 = vxor.u32 %v1422, 2147483648
    %v1429 = vsel %vm1427, %v1414, %v1428
    %vm1430 = vcmp.eq.s32.totalorder %v1425, 2
    %v1431 = vxor.u32 %v1414, 2147483648
    %v1432 = vsel %vm1430, %v1431, %v1422
    %v1433 = vsel %vm1426, %v1429, %v1432
    %v1434 = vsel %vm1423, nan, %v1433
    %s1435 = scalar_lea.vmem [#allocation5], 4
    %1436 = vst [vmem:[%s1435] sm:$0x1] %v1434
    %v1437 = vand.u32 2147483647, %v1279
    %vm1438 = vcmp.le.f32.partialorder %v1437, 0.7853982
    %vm1439 = vcmp.lt.s32.totalorder %v1279, 0
    %v1440 = vand.u32 %v1279, 2139095040
    %v1441 = vshrl.u32 %v1440, 23
    %v1442 = vsub.s32 %v1441, 127
    %v1443 = vand.u32 2147483647, %v1279
    %v1444 = vand.u32 %v1443, 8388607
    %v1445 = vor.u32 %v1444, 8388608
    %v1446 = vsub.s32 0, %v1445
    %v1447 = vadd.s32 %v1442, 1
    %vm1448 = vcmp.gt.s32.totalorder %v1447, 0
    %v1449 = vsel %vm1448, %v1447, 0
    %v1450 = vshrl.u32 %v1449, 5
    %v1451 = vand.u32 %v1449, 31
    %v1452 = vsub.s32 32, %v1451
    %v1453 = vshrl.u32 683565275, %v1452
    %v1454 = vshll.u32 683565275, %v1451
    %v1455 = vshrl.u32 2475754826, %v1452
    %v1456 = vor.u32 %v1454, %v1455
    %v1457 = vshll.u32 2475754826, %v1451
    %v1458 = vshrl.u32 2131351028, %v1452
    %v1459 = vor.u32 %v1457, %v1458
    %v1460 = vshll.u32 2131351028, %v1451
    %v1461 = vshrl.u32 2102212464, %v1452
    %v1462 = vor.u32 %v1460, %v1461
    %v1463 = vshll.u32 2102212464, %v1451
    %v1464 = vshrl.u32 920167782, %v1452
    %v1465 = vor.u32 %v1463, %v1464
    %v1466 = vshll.u32 920167782, %v1451
    %v1467 = vshrl.u32 1326507024, %v1452
    %v1468 = vor.u32 %v1466, %v1467
    %vm1469 = vcmp.lt.s32.totalorder %v1450, 1
    %vm1470 = vcmp.lt.s32.totalorder %v1450, 2
    %vm1471 = vcmp.lt.s32.totalorder %v1450, 3
    %vm1472 = vcmp.lt.s32.totalorder %v1450, 4
    %v1473 = vsel %vm1469, %v1453, %v1456
    %v1474 = vsel %vm1472, %v1462, 2102212464
    %v1475 = vsel %vm1471, %v1459, %v1474
    %v1476 = vsel %vm1470, %v1473, %v1475
    %v1477 = vsel %vm1469, %v1456, %v1459
    %v1478 = vsel %vm1472, %v1465, 920167782
    %v1479 = vsel %vm1471, %v1462, %v1478
    %v1480 = vsel %vm1470, %v1477, %v1479
    %v1481 = vsel %vm1469, %v1459, %v1462
    %v1482 = vsel %vm1472, %v1468, 1326507024
    %v1483 = vsel %vm1471, %v1465, %v1482
    %v1484 = vsel %vm1470, %v1481, %v1483
    %v1485 = vshll.u32 %v1445, 8
    %v1486 = vand.u32 %v1485, 65535
    %v1487 = vshrl.u32 %v1485, 16
    %v1488 = vand.u32 %v1484, 65535
    %v1489 = vshrl.u32 %v1484, 16
    %v1490 = vmul.u32 %v1486, %v1488
    %v1491 = vmul.u32 %v1486, %v1489
    %v1492 = vmul.u32 %v1487, %v1488
    %v1493 = vmul.u32 %v1487, %v1489
    %v1494 = vshll.u32 %v1491, 16
    %v1495 = vshrl.u32 %v1491, 16
    %v1496 = vshll.u32 %v1492, 16
    %v1497 = vshrl.u32 %v1492, 16
    %vm1498 = vc.u32 %v1490, %v1494
    %v1499 = vsel %vm1498, 1, 0
    %v1500 = vadd.s32 %v1490, %v1494
    %v1501 = vadd.s32 %v1493, %v1499
    %vm1502 = vc.u32 %v1500, %v1496
    %v1503 = vsel %vm1502, 1, 0
    %v1504 = vadd.s32 %v1500, %v1496
    %v1505 = vadd.s32 %v1501, %v1503
    %v1506 = vadd.s32 %v1505, %v1495
    %v1507 = vadd.s32 %v1506, %v1497
    %v1508 = vand.u32 %v1485, 65535
    %v1509 = vshrl.u32 %v1485, 16
    %v1510 = vand.u32 %v1480, 65535
    %v1511 = vshrl.u32 %v1480, 16
    %v1512 = vmul.u32 %v1508, %v1510
    %v1513 = vmul.u32 %v1508, %v1511
    %v1514 = vmul.u32 %v1509, %v1510
    %v1515 = vmul.u32 %v1509, %v1511
    %v1516 = vshll.u32 %v1513, 16
    %v1517 = vshrl.u32 %v1513, 16
    %v1518 = vshll.u32 %v1514, 16
    %v1519 = vshrl.u32 %v1514, 16
    %vm1520 = vc.u32 %v1512, %v1516
    %v1521 = vsel %vm1520, 1, 0
    %v1522 = vadd.s32 %v1512, %v1516
    %v1523 = vadd.s32 %v1515, %v1521
    %vm1524 = vc.u32 %v1522, %v1518
    %v1525 = vsel %vm1524, 1, 0
    %v1526 = vadd.s32 %v1522, %v1518
    %v1527 = vadd.s32 %v1523, %v1525
    %v1528 = vadd.s32 %v1527, %v1517
    %v1529 = vadd.s32 %v1528, %v1519
    %v1530 = vmul.u32 %v1485, %v1476
    %v1531 = vadd.s32 %v1507, %v1526
    %vm1532 = vc.u32 %v1507, %v1526
    %v1533 = vadd.s32 %v1529, 1
    %v1534 = vsel %vm1532, %v1533, %v1529
    %v1535 = vadd.s32 %v1530, %v1534
    %v1536 = vadd.s32 %v1535, 536870912
    %v1537 = vshrl.u32 %v1536, 30
    %v1538 = vshll.u32 %v1537, 30
    %v1539 = vsub.s32 %v1535, %v1538
    %vm1540 = vcmp.lt.s32.totalorder %v1539, 0
    %v1541 = vsub.s32 0, %v1539
    %v1542 = vsel %vm1540, %v1541, %v1539
    %v1543 = vclz %v1542
    %v1544 = vsub.s32 %v1543, 2
    %vm1545 = vcmp.gt.s32.totalorder 0, %v1544
    %v1546 = vsel %vm1545, 0, %v1544
    %v1547 = vsub.s32 32, %v1546
    %v1548 = vshll.u32 %v1539, %v1546
    %v1549 = vshrl.u32 %v1531, %v1547
    %v1550 = vor.u32 %v1548, %v1549
    %v1551 = vsub.s32 4294967266, %v1546
    %v1552 = vadd.s32 %v1551, 127
    %v1553 = vshll.u32 %v1552, 23
    %v1554 = vor.u32 4788187, %v1553
    %v1555 = vand.u32 2147483647, %v1554
    %v1557 = vcvt.s32.f32 %v1550
    %v1558 = vmul.f32 %v1557, %v1555
    %v1559 = vxor.u32 %v1558, 2147483648
    %v1560 = vsel %vm1439, %v1559, %v1558
    %v1561 = vsub.s32 4, %v1537
    %v1562 = vsel %vm1439, %v1561, %v1537
    %v1563 = vsel %vm1438, %v1279, %v1560
    %v1564 = vsel %vm1438, 0, %v1562
    %v1565 = vmul.f32 %v1563, %v1563
    %v1566 = vmul.f32 %v1565, -0.001358992
    %v1567 = vadd.f32 %v1566, 0.041655596
    %v1568 = vmul.f32 %v1565, %v1567
    %v1569 = vadd.f32 %v1568, -0.4999988
    %v1570 = vmul.f32 %v1565, %v1569
    %v1571 = vadd.f32 1.0, %v1570
    %v1572 = vmul.f32 %v1563, %v1563
    %v1573 = vmul.f32 %v1572, -0.00019511016
    %v1574 = vadd.f32 %v1573, 0.008332121
    %v1575 = vmul.f32 %v1572, %v1574
    %v1576 = vadd.f32 %v1575, -0.16666654
    %v1577 = vmul.f32 %v1572, %v1576
    %v1578 = vadd.f32 %v1577, 1.0
    %v1579 = vmul.f32 %v1578, %v1563
    %vm1580 = vweird.f32 %v1279
    %v1581 = vand.u32 %v1564, 3
    %vm1582 = vcmp.lt.s32.totalorder %v1581, 2
    %vm1583 = vcmp.eq.s32.totalorder %v1581, 0
    %v1584 = vxor.u32 %v1579, 2147483648
    %v1585 = vsel %vm1583, %v1571, %v1584
    %vm1586 = vcmp.eq.s32.totalorder %v1581, 2
    %v1587 = vxor.u32 %v1571, 2147483648
    %v1588 = vsel %vm1586, %v1587, %v1579
    %v1589 = vsel %vm1582, %v1585, %v1588
    %v1590 = vsel %vm1580, nan, %v1589
    %s1591 = scalar_lea.vmem [#allocation5], 9
    %1592 = vst [vmem:[%s1591] sm:$0x1] %v1590
    // Predicated region
    $region10: #{tpu_custom_call.1} parent=1 // pred_check
      _
    $region11: #{tpu_custom_call.1} parent=1 // pred_check_branch
      %1594 = sbr.rel (0) target = $region13
    $region12: #{tpu_custom_call.1} parent=1 // pred_region
      %1596 = vsyncadd [#allocation4], 0
      %s1597 = sshll.u32 [#allocation5], 4
      %s1598 = int_to_ptr.vmem [resolvable:$true] %s1597
      %s1599 = sshll.u32 %s1, 4
      %s1600 = int_to_ptr.hbm [resolvable:$true] %s1599
      %1605 = dma.vmem_to_hbm [thread:$0]  %s1598, 160, %s1600, [#allocation4], 16, 16, 1
    $region13: #{tpu_custom_call.1} parent=1 // pred_fallthru
      _
    // Predicated region
    $region14: #{tpu_custom_call.1} parent=1 // pred_check
      _
    $region15: #{tpu_custom_call.1} parent=1 // pred_check_branch
      %1607 = sbr.rel (0) target = $region17
    $region16: #{tpu_custom_call.1} parent=1 // pred_region
      %1609 = dma.done [#allocation4], 160
    $region17: #{tpu_custom_call.1} parent=1 // pred_fallthru
      _
    %1610 = vsyncpa [#allocation3], 1
    %1611 = vsyncpa [#allocation4], 1

</llo_original>
